<compile_context>
chip_gen: v5e
topology: v5e:2x2
jax: 0.10.0
libtpu: 0.0.40
codegen_flags: <defaults>
</compile_context>

<pallas_src>
import math
import jax
import jax.numpy as jnp
from jax.experimental import pallas as pl
from jax.experimental.pallas import tpu as pltpu

# ----------------------------- config (small BERT) ---------------------------
VOCAB = 100          # word-piece vocab (synthetic)
TYPE_VOCAB = 2       # token-type (segment) vocab
MAX_POS = 64         # max position embeddings
B, S, H = 2, 8, 32   # batch, seq, hidden
NH = 2               # attention heads
DH = H // NH         # head dim
FFN = 64             # intermediate size
LAYERS = 2           # encoder layers
LN_EPS = 1e-12
ATTN_SCALE = 1.0 / math.sqrt(DH)
BS = B * S           # fused batch*seq rows


# --------------------------------- helpers -----------------------------------
def _layernorm(x, g, b):
    # x: (R, H); g, b: (1, H)
    mu = jnp.mean(x, axis=-1, keepdims=True)
    var = jnp.mean((x - mu) ** 2, axis=-1, keepdims=True)
    return (x - mu) * jax.lax.rsqrt(var + LN_EPS) * g + b


def _gelu(x):
    # tanh approximation of GELU (BERT-style activation)
    c = math.sqrt(2.0 / math.pi)
    return 0.5 * x * (1.0 + jnp.tanh(c * (x + 0.044715 * x * x * x)))


# ------------------------------ fused Pallas kernel ---------------------------
def bert_kernel(emb_ref, bias_ref, embg_ref, embb_ref,
                wqkv_ref, bqkv_ref, wo_ref, bo_ref,
                ln1g_ref, ln1b_ref, w1_ref, b1_ref,
                w2_ref, b2_ref, ln2g_ref, ln2b_ref,
                o_ref):
    """Embedding LayerNorm + LAYERS transformer encoder layers, whole batch."""
    # Embedding LayerNorm over the hidden dim.
    h = _layernorm(emb_ref[...], embg_ref[...], embb_ref[...])      # (BS, H)
    bias = bias_ref[...]                                            # (BS, BS) additive

    for l in range(LAYERS):                                         # static unroll
        # Fused QKV projection: one (BS,H) x (H,3H) matmul on the MXU.
        qkv = (jnp.dot(h, wqkv_ref[l], preferred_element_type=jnp.float32)
               + bqkv_ref[l])                                       # (BS, 3H)
        wo = wo_ref[l]                                              # (H, H)

        # Per-head attention across the whole batch at once; the block-diagonal
        # bias keeps attention within each sequence and masks padded keys.
        attn = None
        for hh in range(NH):                                        # static unroll
            lo = hh * DH
            qh = qkv[:, lo:lo + DH]                                 # (BS, DH)
            kh = qkv[:, H + lo:H + lo + DH]                         # (BS, DH)
            vh = qkv[:, 2 * H + lo:2 * H + lo + DH]                 # (BS, DH)

            scores = (jnp.dot(qh, kh.T, preferred_element_type=jnp.float32)
                      * ATTN_SCALE + bias)                          # (BS, BS)
            scores = scores - jnp.max(scores, axis=-1, keepdims=True)
            p = jnp.exp(scores)
            p = p * pl.reciprocal(jnp.sum(p, axis=-1, keepdims=True), approx=True)
            head = jnp.dot(p, vh, preferred_element_type=jnp.float32)   # (BS, DH)

            # Fold the head concat into the output projection:
            #   ctx @ Wo == sum_h head_h @ Wo[h*DH:(h+1)*DH, :]
            contrib = jnp.dot(head, wo[lo:lo + DH, :],
                              preferred_element_type=jnp.float32)       # (BS, H)
            attn = contrib if attn is None else attn + contrib

        # Attention output bias + residual + LayerNorm
        h1 = _layernorm(h + attn + bo_ref[l], ln1g_ref[l], ln1b_ref[l])

        # Feed-forward + residual + LayerNorm
        inter = _gelu(jnp.dot(h1, w1_ref[l], preferred_element_type=jnp.float32)
                      + b1_ref[l])                                  # (BS, FFN)
        ffn = (jnp.dot(inter, w2_ref[l], preferred_element_type=jnp.float32)
               + b2_ref[l])                                         # (BS, H)
        h = _layernorm(h1 + ffn, ln2g_ref[l], ln2b_ref[l])

    o_ref[...] = h


# ------------------------------ pallas_call wrapper ---------------------------
def _full_spec(shape):
    nd = len(shape)
    return pl.BlockSpec(shape, lambda i, _nd=nd: (0,) * _nd)


def bert_encoder(emb2d, bias, params):
    # emb2d: (BS, H); bias: (BS, BS); params: dict of stacked layer weights.
    ins = [emb2d, bias, params["emb_ln_g"], params["emb_ln_b"],
           params["wqkv"], params["bqkv"], params["wo"], params["bo"],
           params["ln1_g"], params["ln1_b"], params["w1"], params["b1"],
           params["w2"], params["b2"], params["ln2_g"], params["ln2_b"]]
    # TODO(synk): output is (BS, 32) (< 128 lanes) -> masked partial stores; a
    # lane-dense (B, S*H) store needs an in-kernel sublane->lane reshape that
    # is not worth the lowering risk at this size.
    return pl.pallas_call(
        bert_kernel,
        out_shape=jax.ShapeDtypeStruct((BS, H), jnp.float32),
        grid=(1,),
        in_specs=[_full_spec(a.shape) for a in ins],
        out_specs=pl.BlockSpec((BS, H), lambda i: (0, 0)),
        compiler_params=pltpu.CompilerParams(
            dimension_semantics=("arbitrary",)),
    )(*ins)


# ------------------------------ parameter init --------------------------------
def init_params(key):
    def normal(k, shape, std=0.02):
        return (std * jax.random.normal(k, shape)).astype(jnp.float32)

    keys = jax.random.split(key, 4 + LAYERS)
    wqkv, wo, w1, w2 = [], [], [], []
    for i in range(LAYERS):
        lk = jax.random.split(keys[4 + i], 6)
        wq = normal(lk[0], (H, H))
        wk = normal(lk[1], (H, H))
        wv = normal(lk[2], (H, H))
        wqkv.append(jnp.concatenate([wq, wk, wv], axis=1))   # (H, 3H)
        wo.append(normal(lk[3], (H, H)))
        w1.append(normal(lk[4], (H, FFN)))
        w2.append(normal(lk[5], (FFN, H)))

    params = {
        "word_emb": normal(keys[0], (VOCAB, H)),
        "pos_emb": normal(keys[1], (MAX_POS, H)),
        "type_emb": normal(keys[2], (TYPE_VOCAB, H)),
        "emb_ln_g": jnp.ones((1, H), jnp.float32),
        "emb_ln_b": jnp.zeros((1, H), jnp.float32),
        # Stacked (LAYERS, ...) weights so a single kernel loops over layers.
        "wqkv": jnp.stack(wqkv),                              # (L, H, 3H)
        "bqkv": jnp.zeros((LAYERS, 1, 3 * H), jnp.float32),
        "wo": jnp.stack(wo),                                  # (L, H, H)
        "bo": jnp.zeros((LAYERS, 1, H), jnp.float32),
        "ln1_g": jnp.ones((LAYERS, 1, H), jnp.float32),
        "ln1_b": jnp.zeros((LAYERS, 1, H), jnp.float32),
        "w1": jnp.stack(w1),                                  # (L, H, FFN)
        "b1": jnp.zeros((LAYERS, 1, FFN), jnp.float32),
        "w2": jnp.stack(w2),                                  # (L, FFN, H)
        "b2": jnp.zeros((LAYERS, 1, H), jnp.float32),
        "ln2_g": jnp.ones((LAYERS, 1, H), jnp.float32),
        "ln2_b": jnp.zeros((LAYERS, 1, H), jnp.float32),
    }
    return params


# --------------------------------- forward ------------------------------------
def model_forward(params, x_ids, segs, mask):
    """Equivalent of Model.forward: returns top_vec = last hidden states [B,S,H]."""
    # Embedding gathers are glue (plain JAX); everything else runs in one Pallas call.
    positions = jnp.arange(S, dtype=jnp.int32)
    emb = (params["word_emb"][x_ids]
           + params["pos_emb"][positions][None, :, :]
           + params["type_emb"][segs])                       # (B, S, H)
    emb2d = emb.reshape(BS, H)

    # Block-diagonal additive attention bias (BS, BS): cross-sequence and
    # padded keys get -10000 (standard BERT additive-mask semantics).
    key_mask = mask.astype(jnp.float32).reshape(BS)          # flattened key mask
    batch_idx = jnp.arange(BS, dtype=jnp.int32) // S
    same = (batch_idx[:, None] == batch_idx[None, :]).astype(jnp.float32)
    allow = same * key_mask[None, :]
    bias = (1.0 - allow) * -10000.0                          # (BS, BS)

    top = bert_encoder(emb2d, bias, params)                  # (BS, H)
    return top.reshape(B, S, H)                              # top_vec


# ----------------------------------- main --------------------------------------
if __name__ == "__main__":
    key = jax.random.PRNGKey(0)
    pk, xk, sk = jax.random.split(key, 3)
    params = init_params(pk)

    x_ids = jax.random.randint(xk, (B, S), 0, VOCAB, dtype=jnp.int32)
    segs = jax.random.randint(sk, (B, S), 0, TYPE_VOCAB, dtype=jnp.int32)
    # mask: first sequence fully attended, second sequence padded after 5 tokens
    mask = jnp.array([[1] * S, [1] * 5 + [0] * (S - 5)], dtype=jnp.int32)

    top_vec = jax.jit(model_forward)(params, x_ids, segs, mask)
    top_vec = jax.block_until_ready(top_vec)

    assert top_vec.shape == (B, S, H)
    assert top_vec.dtype == jnp.float32
    assert bool(jnp.all(jnp.isfinite(top_vec)))
    print("KERNEL_OK")
</pallas_src>

<mosaic_0001>
module attributes {stable_mosaic.version = 11 : i64} {
  func.func @bert_kernel(%arg0: i32, %arg1: memref<16x32xf32, #tpu.memory_space<vmem>>, %arg2: memref<16x16xf32, #tpu.memory_space<vmem>>, %arg3: memref<1x32xf32, #tpu.memory_space<vmem>>, %arg4: memref<1x32xf32, #tpu.memory_space<vmem>>, %arg5: memref<2x32x96xf32, #tpu.memory_space<vmem>>, %arg6: memref<2x1x96xf32, #tpu.memory_space<vmem>>, %arg7: memref<2x32x32xf32, #tpu.memory_space<vmem>>, %arg8: memref<2x1x32xf32, #tpu.memory_space<vmem>>, %arg9: memref<2x1x32xf32, #tpu.memory_space<vmem>>, %arg10: memref<2x1x32xf32, #tpu.memory_space<vmem>>, %arg11: memref<2x32x64xf32, #tpu.memory_space<vmem>>, %arg12: memref<2x1x64xf32, #tpu.memory_space<vmem>>, %arg13: memref<2x64x32xf32, #tpu.memory_space<vmem>>, %arg14: memref<2x1x32xf32, #tpu.memory_space<vmem>>, %arg15: memref<2x1x32xf32, #tpu.memory_space<vmem>>, %arg16: memref<2x1x32xf32, #tpu.memory_space<vmem>>, %arg17: memref<16x32xf32, #tpu.memory_space<vmem>>) attributes {dimension_semantics = [#tpu.dimension_semantics<arbitrary>], iteration_bounds = array<i64: 1>, scalar_prefetch = 0 : i64, scratch_operands = 0 : i64, tpu.core_type = #tpu.core_type<tc>, window_params = [{pipeline_mode = #tpu.pipeline_mode<synchronous>, transform_indices = @transform_0, window_bounds = array<i64: 16, 32>}, {pipeline_mode = #tpu.pipeline_mode<synchronous>, transform_indices = @transform_1, window_bounds = array<i64: 16, 16>}, {pipeline_mode = #tpu.pipeline_mode<synchronous>, transform_indices = @transform_2, window_bounds = array<i64: 1, 32>}, {pipeline_mode = #tpu.pipeline_mode<synchronous>, transform_indices = @transform_3, window_bounds = array<i64: 1, 32>}, {pipeline_mode = #tpu.pipeline_mode<synchronous>, transform_indices = @transform_4, window_bounds = array<i64: 2, 32, 96>}, {pipeline_mode = #tpu.pipeline_mode<synchronous>, transform_indices = @transform_5, window_bounds = array<i64: 2, 1, 96>}, {pipeline_mode = #tpu.pipeline_mode<synchronous>, transform_indices = @transform_6, window_bounds = array<i64: 2, 32, 32>}, {pipeline_mode = #tpu.pipeline_mode<synchronous>, transform_indices = @transform_7, window_bounds = array<i64: 2, 1, 32>}, {pipeline_mode = #tpu.pipeline_mode<synchronous>, transform_indices = @transform_8, window_bounds = array<i64: 2, 1, 32>}, {pipeline_mode = #tpu.pipeline_mode<synchronous>, transform_indices = @transform_9, window_bounds = array<i64: 2, 1, 32>}, {pipeline_mode = #tpu.pipeline_mode<synchronous>, transform_indices = @transform_10, window_bounds = array<i64: 2, 32, 64>}, {pipeline_mode = #tpu.pipeline_mode<synchronous>, transform_indices = @transform_11, window_bounds = array<i64: 2, 1, 64>}, {pipeline_mode = #tpu.pipeline_mode<synchronous>, transform_indices = @transform_12, window_bounds = array<i64: 2, 64, 32>}, {pipeline_mode = #tpu.pipeline_mode<synchronous>, transform_indices = @transform_13, window_bounds = array<i64: 2, 1, 32>}, {pipeline_mode = #tpu.pipeline_mode<synchronous>, transform_indices = @transform_14, window_bounds = array<i64: 2, 1, 32>}, {pipeline_mode = #tpu.pipeline_mode<synchronous>, transform_indices = @transform_15, window_bounds = array<i64: 2, 1, 32>}, {pipeline_mode = #tpu.pipeline_mode<synchronous>, transform_indices = @transform_16, window_bounds = array<i64: 16, 32>}]} {
    %c0 = arith.constant 0 : index
    %c0_0 = arith.constant 0 : index
    %0 = vector.load %arg1[%c0, %c0_0] : memref<16x32xf32, #tpu.memory_space<vmem>>, vector<16x32xf32>
    %c0_1 = arith.constant 0 : index
    %c0_2 = arith.constant 0 : index
    %1 = vector.load %arg3[%c0_1, %c0_2] : memref<1x32xf32, #tpu.memory_space<vmem>>, vector<1x32xf32>
    %c0_3 = arith.constant 0 : index
    %c0_4 = arith.constant 0 : index
    %2 = vector.load %arg4[%c0_3, %c0_4] : memref<1x32xf32, #tpu.memory_space<vmem>>, vector<1x32xf32>
    %cst = arith.constant dense<0.000000e+00> : vector<16xf32>
    %3 = vector.multi_reduction <add>, %0, %cst [1] : vector<16x32xf32> to vector<16xf32>
    %4 = vector.shape_cast %3 : vector<16xf32> to vector<16x1xf32>
    %cst_5 = arith.constant 3.200000e+01 : f32
    %5 = vector.broadcast %cst_5 : f32 to vector<16x1xf32>
    %6 = arith.divf %4, %5 : vector<16x1xf32>
    %7 = vector.broadcast %6 : vector<16x1xf32> to vector<16x32xf32>
    %8 = arith.subf %0, %7 : vector<16x32xf32>
    %9 = arith.mulf %8, %8 : vector<16x32xf32>
    %cst_6 = arith.constant dense<0.000000e+00> : vector<16xf32>
    %10 = vector.multi_reduction <add>, %9, %cst_6 [1] : vector<16x32xf32> to vector<16xf32>
    %11 = vector.shape_cast %10 : vector<16xf32> to vector<16x1xf32>
    %cst_7 = arith.constant 3.200000e+01 : f32
    %12 = vector.broadcast %cst_7 : f32 to vector<16x1xf32>
    %13 = arith.divf %11, %12 : vector<16x1xf32>
    %14 = vector.broadcast %6 : vector<16x1xf32> to vector<16x32xf32>
    %15 = arith.subf %0, %14 : vector<16x32xf32>
    %cst_8 = arith.constant 9.99999996E-13 : f32
    %16 = vector.broadcast %cst_8 : f32 to vector<16x1xf32>
    %17 = arith.addf %13, %16 : vector<16x1xf32>
    %18 = math.rsqrt %17 : vector<16x1xf32>
    %19 = vector.broadcast %18 : vector<16x1xf32> to vector<16x32xf32>
    %20 = arith.mulf %15, %19 : vector<16x32xf32>
    %21 = vector.broadcast %1 : vector<1x32xf32> to vector<16x32xf32>
    %22 = arith.mulf %20, %21 : vector<16x32xf32>
    %23 = vector.broadcast %2 : vector<1x32xf32> to vector<16x32xf32>
    %24 = arith.addf %22, %23 : vector<16x32xf32>
    %c0_9 = arith.constant 0 : index
    %c0_10 = arith.constant 0 : index
    %25 = vector.load %arg2[%c0_9, %c0_10] : memref<16x16xf32, #tpu.memory_space<vmem>>, vector<16x16xf32>
    %c0_11 = arith.constant 0 : index
    %c0_12 = arith.constant 0 : index
    %c0_13 = arith.constant 0 : index
    %26 = vector.load %arg5[%c0_11, %c0_12, %c0_13] : memref<2x32x96xf32, #tpu.memory_space<vmem>>, vector<1x32x96xf32>
    %27 = vector.shape_cast %26 : vector<1x32x96xf32> to vector<32x96xf32>
    %cst_14 = arith.constant dense<0.000000e+00> : vector<16x96xf32>
    %28 = tpu.matmul %24, %27, %cst_14 {dimension_numbers = #tpu.dot_dimension_numbers<[1], [0], [0], [1], [0, 0, 1, 1], [], []>} : vector<16x32xf32>, vector<32x96xf32>, vector<16x96xf32> -> vector<16x96xf32>
    %c0_15 = arith.constant 0 : index
    %c0_16 = arith.constant 0 : index
    %c0_17 = arith.constant 0 : index
    %29 = vector.load %arg6[%c0_15, %c0_16, %c0_17] : memref<2x1x96xf32, #tpu.memory_space<vmem>>, vector<1x1x96xf32>
    %30 = vector.shape_cast %29 : vector<1x1x96xf32> to vector<1x96xf32>
    %31 = vector.broadcast %30 : vector<1x96xf32> to vector<16x96xf32>
    %32 = arith.addf %28, %31 : vector<16x96xf32>
    %c0_18 = arith.constant 0 : index
    %c0_19 = arith.constant 0 : index
    %c0_20 = arith.constant 0 : index
    %33 = vector.load %arg7[%c0_18, %c0_19, %c0_20] : memref<2x32x32xf32, #tpu.memory_space<vmem>>, vector<1x32x32xf32>
    %34 = vector.shape_cast %33 : vector<1x32x32xf32> to vector<32x32xf32>
    %35 = vector.extract_strided_slice %32 {offsets = [0, 0], sizes = [16, 16], strides = [1, 1]} : vector<16x96xf32> to vector<16x16xf32>
    %36 = vector.extract_strided_slice %32 {offsets = [0, 32], sizes = [16, 16], strides = [1, 1]} : vector<16x96xf32> to vector<16x16xf32>
    %37 = vector.extract_strided_slice %32 {offsets = [0, 64], sizes = [16, 16], strides = [1, 1]} : vector<16x96xf32> to vector<16x16xf32>
    %38 = tpu.transpose %36, [1, 0] : vector<16x16xf32> -> vector<16x16xf32>
    %cst_21 = arith.constant dense<0.000000e+00> : vector<16x16xf32>
    %39 = tpu.matmul %35, %38, %cst_21 {dimension_numbers = #tpu.dot_dimension_numbers<[1], [0], [0], [1], [0, 0, 1, 1], [], []>} : vector<16x16xf32>, vector<16x16xf32>, vector<16x16xf32> -> vector<16x16xf32>
    %cst_22 = arith.constant 2.500000e-01 : f32
    %40 = vector.broadcast %cst_22 : f32 to vector<16x16xf32>
    %41 = arith.mulf %39, %40 : vector<16x16xf32>
    %42 = arith.addf %41, %25 : vector<16x16xf32>
    %cst_23 = arith.constant dense<0xFF800000> : vector<16xf32>
    %43 = vector.multi_reduction <maximumf>, %42, %cst_23 [1] : vector<16x16xf32> to vector<16xf32>
    %44 = vector.shape_cast %43 : vector<16xf32> to vector<16x1xf32>
    %45 = vector.broadcast %44 : vector<16x1xf32> to vector<16x16xf32>
    %46 = arith.subf %42, %45 : vector<16x16xf32>
    %47 = math.exp %46 : vector<16x16xf32>
    %cst_24 = arith.constant dense<0.000000e+00> : vector<16xf32>
    %48 = vector.multi_reduction <add>, %47, %cst_24 [1] : vector<16x16xf32> to vector<16xf32>
    %49 = vector.shape_cast %48 : vector<16xf32> to vector<16x1xf32>
    %50 = tpu.reciprocal %49 {approx = true} : vector<16x1xf32> -> vector<16x1xf32>
    %51 = vector.broadcast %50 : vector<16x1xf32> to vector<16x16xf32>
    %52 = arith.mulf %47, %51 : vector<16x16xf32>
    %cst_25 = arith.constant dense<0.000000e+00> : vector<16x16xf32>
    %53 = tpu.matmul %52, %37, %cst_25 {dimension_numbers = #tpu.dot_dimension_numbers<[1], [0], [0], [1], [0, 0, 1, 1], [], []>} : vector<16x16xf32>, vector<16x16xf32>, vector<16x16xf32> -> vector<16x16xf32>
    %54 = vector.extract_strided_slice %34 {offsets = [0, 0], sizes = [16, 32], strides = [1, 1]} : vector<32x32xf32> to vector<16x32xf32>
    %cst_26 = arith.constant dense<0.000000e+00> : vector<16x32xf32>
    %55 = tpu.matmul %53, %54, %cst_26 {dimension_numbers = #tpu.dot_dimension_numbers<[1], [0], [0], [1], [0, 0, 1, 1], [], []>} : vector<16x16xf32>, vector<16x32xf32>, vector<16x32xf32> -> vector<16x32xf32>
    %56 = vector.extract_strided_slice %32 {offsets = [0, 16], sizes = [16, 16], strides = [1, 1]} : vector<16x96xf32> to vector<16x16xf32>
    %57 = vector.extract_strided_slice %32 {offsets = [0, 48], sizes = [16, 16], strides = [1, 1]} : vector<16x96xf32> to vector<16x16xf32>
    %58 = vector.extract_strided_slice %32 {offsets = [0, 80], sizes = [16, 16], strides = [1, 1]} : vector<16x96xf32> to vector<16x16xf32>
    %59 = tpu.transpose %57, [1, 0] : vector<16x16xf32> -> vector<16x16xf32>
    %cst_27 = arith.constant dense<0.000000e+00> : vector<16x16xf32>
    %60 = tpu.matmul %56, %59, %cst_27 {dimension_numbers = #tpu.dot_dimension_numbers<[1], [0], [0], [1], [0, 0, 1, 1], [], []>} : vector<16x16xf32>, vector<16x16xf32>, vector<16x16xf32> -> vector<16x16xf32>
    %cst_28 = arith.constant 2.500000e-01 : f32
    %61 = vector.broadcast %cst_28 : f32 to vector<16x16xf32>
    %62 = arith.mulf %60, %61 : vector<16x16xf32>
    %63 = arith.addf %62, %25 : vector<16x16xf32>
    %cst_29 = arith.constant dense<0xFF800000> : vector<16xf32>
    %64 = vector.multi_reduction <maximumf>, %63, %cst_29 [1] : vector<16x16xf32> to vector<16xf32>
    %65 = vector.shape_cast %64 : vector<16xf32> to vector<16x1xf32>
    %66 = vector.broadcast %65 : vector<16x1xf32> to vector<16x16xf32>
    %67 = arith.subf %63, %66 : vector<16x16xf32>
    %68 = math.exp %67 : vector<16x16xf32>
    %cst_30 = arith.constant dense<0.000000e+00> : vector<16xf32>
    %69 = vector.multi_reduction <add>, %68, %cst_30 [1] : vector<16x16xf32> to vector<16xf32>
    %70 = vector.shape_cast %69 : vector<16xf32> to vector<16x1xf32>
    %71 = tpu.reciprocal %70 {approx = true} : vector<16x1xf32> -> vector<16x1xf32>
    %72 = vector.broadcast %71 : vector<16x1xf32> to vector<16x16xf32>
    %73 = arith.mulf %68, %72 : vector<16x16xf32>
    %cst_31 = arith.constant dense<0.000000e+00> : vector<16x16xf32>
    %74 = tpu.matmul %73, %58, %cst_31 {dimension_numbers = #tpu.dot_dimension_numbers<[1], [0], [0], [1], [0, 0, 1, 1], [], []>} : vector<16x16xf32>, vector<16x16xf32>, vector<16x16xf32> -> vector<16x16xf32>
    %75 = vector.extract_strided_slice %34 {offsets = [16, 0], sizes = [16, 32], strides = [1, 1]} : vector<32x32xf32> to vector<16x32xf32>
    %cst_32 = arith.constant dense<0.000000e+00> : vector<16x32xf32>
    %76 = tpu.matmul %74, %75, %cst_32 {dimension_numbers = #tpu.dot_dimension_numbers<[1], [0], [0], [1], [0, 0, 1, 1], [], []>} : vector<16x16xf32>, vector<16x32xf32>, vector<16x32xf32> -> vector<16x32xf32>
    %77 = arith.addf %55, %76 : vector<16x32xf32>
    %78 = arith.addf %24, %77 : vector<16x32xf32>
    %c0_33 = arith.constant 0 : index
    %c0_34 = arith.constant 0 : index
    %c0_35 = arith.constant 0 : index
    %79 = vector.load %arg8[%c0_33, %c0_34, %c0_35] : memref<2x1x32xf32, #tpu.memory_space<vmem>>, vector<1x1x32xf32>
    %80 = vector.shape_cast %79 : vector<1x1x32xf32> to vector<1x32xf32>
    %81 = vector.broadcast %80 : vector<1x32xf32> to vector<16x32xf32>
    %82 = arith.addf %78, %81 : vector<16x32xf32>
    %c0_36 = arith.constant 0 : index
    %c0_37 = arith.constant 0 : index
    %c0_38 = arith.constant 0 : index
    %83 = vector.load %arg9[%c0_36, %c0_37, %c0_38] : memref<2x1x32xf32, #tpu.memory_space<vmem>>, vector<1x1x32xf32>
    %84 = vector.shape_cast %83 : vector<1x1x32xf32> to vector<1x32xf32>
    %c0_39 = arith.constant 0 : index
    %c0_40 = arith.constant 0 : index
    %c0_41 = arith.constant 0 : index
    %85 = vector.load %arg10[%c0_39, %c0_40, %c0_41] : memref<2x1x32xf32, #tpu.memory_space<vmem>>, vector<1x1x32xf32>
    %86 = vector.shape_cast %85 : vector<1x1x32xf32> to vector<1x32xf32>
    %cst_42 = arith.constant dense<0.000000e+00> : vector<16xf32>
    %87 = vector.multi_reduction <add>, %82, %cst_42 [1] : vector<16x32xf32> to vector<16xf32>
    %88 = vector.shape_cast %87 : vector<16xf32> to vector<16x1xf32>
    %cst_43 = arith.constant 3.200000e+01 : f32
    %89 = vector.broadcast %cst_43 : f32 to vector<16x1xf32>
    %90 = arith.divf %88, %89 : vector<16x1xf32>
    %91 = vector.broadcast %90 : vector<16x1xf32> to vector<16x32xf32>
    %92 = arith.subf %82, %91 : vector<16x32xf32>
    %93 = arith.mulf %92, %92 : vector<16x32xf32>
    %cst_44 = arith.constant dense<0.000000e+00> : vector<16xf32>
    %94 = vector.multi_reduction <add>, %93, %cst_44 [1] : vector<16x32xf32> to vector<16xf32>
    %95 = vector.shape_cast %94 : vector<16xf32> to vector<16x1xf32>
    %cst_45 = arith.constant 3.200000e+01 : f32
    %96 = vector.broadcast %cst_45 : f32 to vector<16x1xf32>
    %97 = arith.divf %95, %96 : vector<16x1xf32>
    %98 = vector.broadcast %90 : vector<16x1xf32> to vector<16x32xf32>
    %99 = arith.subf %82, %98 : vector<16x32xf32>
    %cst_46 = arith.constant 9.99999996E-13 : f32
    %100 = vector.broadcast %cst_46 : f32 to vector<16x1xf32>
    %101 = arith.addf %97, %100 : vector<16x1xf32>
    %102 = math.rsqrt %101 : vector<16x1xf32>
    %103 = vector.broadcast %102 : vector<16x1xf32> to vector<16x32xf32>
    %104 = arith.mulf %99, %103 : vector<16x32xf32>
    %105 = vector.broadcast %84 : vector<1x32xf32> to vector<16x32xf32>
    %106 = arith.mulf %104, %105 : vector<16x32xf32>
    %107 = vector.broadcast %86 : vector<1x32xf32> to vector<16x32xf32>
    %108 = arith.addf %106, %107 : vector<16x32xf32>
    %c0_47 = arith.constant 0 : index
    %c0_48 = arith.constant 0 : index
    %c0_49 = arith.constant 0 : index
    %109 = vector.load %arg11[%c0_47, %c0_48, %c0_49] : memref<2x32x64xf32, #tpu.memory_space<vmem>>, vector<1x32x64xf32>
    %110 = vector.shape_cast %109 : vector<1x32x64xf32> to vector<32x64xf32>
    %cst_50 = arith.constant dense<0.000000e+00> : vector<16x64xf32>
    %111 = tpu.matmul %108, %110, %cst_50 {dimension_numbers = #tpu.dot_dimension_numbers<[1], [0], [0], [1], [0, 0, 1, 1], [], []>} : vector<16x32xf32>, vector<32x64xf32>, vector<16x64xf32> -> vector<16x64xf32>
    %c0_51 = arith.constant 0 : index
    %c0_52 = arith.constant 0 : index
    %c0_53 = arith.constant 0 : index
    %112 = vector.load %arg12[%c0_51, %c0_52, %c0_53] : memref<2x1x64xf32, #tpu.memory_space<vmem>>, vector<1x1x64xf32>
    %113 = vector.shape_cast %112 : vector<1x1x64xf32> to vector<1x64xf32>
    %114 = vector.broadcast %113 : vector<1x64xf32> to vector<16x64xf32>
    %115 = arith.addf %111, %114 : vector<16x64xf32>
    %cst_54 = arith.constant 5.000000e-01 : f32
    %116 = vector.broadcast %cst_54 : f32 to vector<16x64xf32>
    %117 = arith.mulf %116, %115 : vector<16x64xf32>
    %cst_55 = arith.constant 4.471500e-02 : f32
    %118 = vector.broadcast %cst_55 : f32 to vector<16x64xf32>
    %119 = arith.mulf %118, %115 : vector<16x64xf32>
    %120 = arith.mulf %119, %115 : vector<16x64xf32>
    %121 = arith.mulf %120, %115 : vector<16x64xf32>
    %122 = arith.addf %115, %121 : vector<16x64xf32>
    %cst_56 = arith.constant 0.797884583 : f32
    %123 = vector.broadcast %cst_56 : f32 to vector<16x64xf32>
    %124 = arith.mulf %123, %122 : vector<16x64xf32>
    %125 = math.tanh %124 : vector<16x64xf32>
    %cst_57 = arith.constant 1.000000e+00 : f32
    %126 = vector.broadcast %cst_57 : f32 to vector<16x64xf32>
    %127 = arith.addf %126, %125 : vector<16x64xf32>
    %128 = arith.mulf %117, %127 : vector<16x64xf32>
    %c0_58 = arith.constant 0 : index
    %c0_59 = arith.constant 0 : index
    %c0_60 = arith.constant 0 : index
    %129 = vector.load %arg13[%c0_58, %c0_59, %c0_60] : memref<2x64x32xf32, #tpu.memory_space<vmem>>, vector<1x64x32xf32>
    %130 = vector.shape_cast %129 : vector<1x64x32xf32> to vector<64x32xf32>
    %cst_61 = arith.constant dense<0.000000e+00> : vector<16x32xf32>
    %131 = tpu.matmul %128, %130, %cst_61 {dimension_numbers = #tpu.dot_dimension_numbers<[1], [0], [0], [1], [0, 0, 1, 1], [], []>} : vector<16x64xf32>, vector<64x32xf32>, vector<16x32xf32> -> vector<16x32xf32>
    %c0_62 = arith.constant 0 : index
    %c0_63 = arith.constant 0 : index
    %c0_64 = arith.constant 0 : index
    %132 = vector.load %arg14[%c0_62, %c0_63, %c0_64] : memref<2x1x32xf32, #tpu.memory_space<vmem>>, vector<1x1x32xf32>
    %133 = vector.shape_cast %132 : vector<1x1x32xf32> to vector<1x32xf32>
    %134 = vector.broadcast %133 : vector<1x32xf32> to vector<16x32xf32>
    %135 = arith.addf %131, %134 : vector<16x32xf32>
    %136 = arith.addf %108, %135 : vector<16x32xf32>
    %c0_65 = arith.constant 0 : index
    %c0_66 = arith.constant 0 : index
    %c0_67 = arith.constant 0 : index
    %137 = vector.load %arg15[%c0_65, %c0_66, %c0_67] : memref<2x1x32xf32, #tpu.memory_space<vmem>>, vector<1x1x32xf32>
    %138 = vector.shape_cast %137 : vector<1x1x32xf32> to vector<1x32xf32>
    %c0_68 = arith.constant 0 : index
    %c0_69 = arith.constant 0 : index
    %c0_70 = arith.constant 0 : index
    %139 = vector.load %arg16[%c0_68, %c0_69, %c0_70] : memref<2x1x32xf32, #tpu.memory_space<vmem>>, vector<1x1x32xf32>
    %140 = vector.shape_cast %139 : vector<1x1x32xf32> to vector<1x32xf32>
    %cst_71 = arith.constant dense<0.000000e+00> : vector<16xf32>
    %141 = vector.multi_reduction <add>, %136, %cst_71 [1] : vector<16x32xf32> to vector<16xf32>
    %142 = vector.shape_cast %141 : vector<16xf32> to vector<16x1xf32>
    %cst_72 = arith.constant 3.200000e+01 : f32
    %143 = vector.broadcast %cst_72 : f32 to vector<16x1xf32>
    %144 = arith.divf %142, %143 : vector<16x1xf32>
    %145 = vector.broadcast %144 : vector<16x1xf32> to vector<16x32xf32>
    %146 = arith.subf %136, %145 : vector<16x32xf32>
    %147 = arith.mulf %146, %146 : vector<16x32xf32>
    %cst_73 = arith.constant dense<0.000000e+00> : vector<16xf32>
    %148 = vector.multi_reduction <add>, %147, %cst_73 [1] : vector<16x32xf32> to vector<16xf32>
    %149 = vector.shape_cast %148 : vector<16xf32> to vector<16x1xf32>
    %cst_74 = arith.constant 3.200000e+01 : f32
    %150 = vector.broadcast %cst_74 : f32 to vector<16x1xf32>
    %151 = arith.divf %149, %150 : vector<16x1xf32>
    %152 = vector.broadcast %144 : vector<16x1xf32> to vector<16x32xf32>
    %153 = arith.subf %136, %152 : vector<16x32xf32>
    %cst_75 = arith.constant 9.99999996E-13 : f32
    %154 = vector.broadcast %cst_75 : f32 to vector<16x1xf32>
    %155 = arith.addf %151, %154 : vector<16x1xf32>
    %156 = math.rsqrt %155 : vector<16x1xf32>
    %157 = vector.broadcast %156 : vector<16x1xf32> to vector<16x32xf32>
    %158 = arith.mulf %153, %157 : vector<16x32xf32>
    %159 = vector.broadcast %138 : vector<1x32xf32> to vector<16x32xf32>
    %160 = arith.mulf %158, %159 : vector<16x32xf32>
    %161 = vector.broadcast %140 : vector<1x32xf32> to vector<16x32xf32>
    %162 = arith.addf %160, %161 : vector<16x32xf32>
    %c1 = arith.constant 1 : index
    %c0_76 = arith.constant 0 : index
    %c0_77 = arith.constant 0 : index
    %163 = vector.load %arg5[%c1, %c0_76, %c0_77] : memref<2x32x96xf32, #tpu.memory_space<vmem>>, vector<1x32x96xf32>
    %164 = vector.shape_cast %163 : vector<1x32x96xf32> to vector<32x96xf32>
    %cst_78 = arith.constant dense<0.000000e+00> : vector<16x96xf32>
    %165 = tpu.matmul %162, %164, %cst_78 {dimension_numbers = #tpu.dot_dimension_numbers<[1], [0], [0], [1], [0, 0, 1, 1], [], []>} : vector<16x32xf32>, vector<32x96xf32>, vector<16x96xf32> -> vector<16x96xf32>
    %c1_79 = arith.constant 1 : index
    %c0_80 = arith.constant 0 : index
    %c0_81 = arith.constant 0 : index
    %166 = vector.load %arg6[%c1_79, %c0_80, %c0_81] : memref<2x1x96xf32, #tpu.memory_space<vmem>>, vector<1x1x96xf32>
    %167 = vector.shape_cast %166 : vector<1x1x96xf32> to vector<1x96xf32>
    %168 = vector.broadcast %167 : vector<1x96xf32> to vector<16x96xf32>
    %169 = arith.addf %165, %168 : vector<16x96xf32>
    %c1_82 = arith.constant 1 : index
    %c0_83 = arith.constant 0 : index
    %c0_84 = arith.constant 0 : index
    %170 = vector.load %arg7[%c1_82, %c0_83, %c0_84] : memref<2x32x32xf32, #tpu.memory_space<vmem>>, vector<1x32x32xf32>
    %171 = vector.shape_cast %170 : vector<1x32x32xf32> to vector<32x32xf32>
    %172 = vector.extract_strided_slice %169 {offsets = [0, 0], sizes = [16, 16], strides = [1, 1]} : vector<16x96xf32> to vector<16x16xf32>
    %173 = vector.extract_strided_slice %169 {offsets = [0, 32], sizes = [16, 16], strides = [1, 1]} : vector<16x96xf32> to vector<16x16xf32>
    %174 = vector.extract_strided_slice %169 {offsets = [0, 64], sizes = [16, 16], strides = [1, 1]} : vector<16x96xf32> to vector<16x16xf32>
    %175 = tpu.transpose %173, [1, 0] : vector<16x16xf32> -> vector<16x16xf32>
    %cst_85 = arith.constant dense<0.000000e+00> : vector<16x16xf32>
    %176 = tpu.matmul %172, %175, %cst_85 {dimension_numbers = #tpu.dot_dimension_numbers<[1], [0], [0], [1], [0, 0, 1, 1], [], []>} : vector<16x16xf32>, vector<16x16xf32>, vector<16x16xf32> -> vector<16x16xf32>
    %cst_86 = arith.constant 2.500000e-01 : f32
    %177 = vector.broadcast %cst_86 : f32 to vector<16x16xf32>
    %178 = arith.mulf %176, %177 : vector<16x16xf32>
    %179 = arith.addf %178, %25 : vector<16x16xf32>
    %cst_87 = arith.constant dense<0xFF800000> : vector<16xf32>
    %180 = vector.multi_reduction <maximumf>, %179, %cst_87 [1] : vector<16x16xf32> to vector<16xf32>
    %181 = vector.shape_cast %180 : vector<16xf32> to vector<16x1xf32>
    %182 = vector.broadcast %181 : vector<16x1xf32> to vector<16x16xf32>
    %183 = arith.subf %179, %182 : vector<16x16xf32>
    %184 = math.exp %183 : vector<16x16xf32>
    %cst_88 = arith.constant dense<0.000000e+00> : vector<16xf32>
    %185 = vector.multi_reduction <add>, %184, %cst_88 [1] : vector<16x16xf32> to vector<16xf32>
    %186 = vector.shape_cast %185 : vector<16xf32> to vector<16x1xf32>
    %187 = tpu.reciprocal %186 {approx = true} : vector<16x1xf32> -> vector<16x1xf32>
    %188 = vector.broadcast %187 : vector<16x1xf32> to vector<16x16xf32>
    %189 = arith.mulf %184, %188 : vector<16x16xf32>
    %cst_89 = arith.constant dense<0.000000e+00> : vector<16x16xf32>
    %190 = tpu.matmul %189, %174, %cst_89 {dimension_numbers = #tpu.dot_dimension_numbers<[1], [0], [0], [1], [0, 0, 1, 1], [], []>} : vector<16x16xf32>, vector<16x16xf32>, vector<16x16xf32> -> vector<16x16xf32>
    %191 = vector.extract_strided_slice %171 {offsets = [0, 0], sizes = [16, 32], strides = [1, 1]} : vector<32x32xf32> to vector<16x32xf32>
    %cst_90 = arith.constant dense<0.000000e+00> : vector<16x32xf32>
    %192 = tpu.matmul %190, %191, %cst_90 {dimension_numbers = #tpu.dot_dimension_numbers<[1], [0], [0], [1], [0, 0, 1, 1], [], []>} : vector<16x16xf32>, vector<16x32xf32>, vector<16x32xf32> -> vector<16x32xf32>
    %193 = vector.extract_strided_slice %169 {offsets = [0, 16], sizes = [16, 16], strides = [1, 1]} : vector<16x96xf32> to vector<16x16xf32>
    %194 = vector.extract_strided_slice %169 {offsets = [0, 48], sizes = [16, 16], strides = [1, 1]} : vector<16x96xf32> to vector<16x16xf32>
    %195 = vector.extract_strided_slice %169 {offsets = [0, 80], sizes = [16, 16], strides = [1, 1]} : vector<16x96xf32> to vector<16x16xf32>
    %196 = tpu.transpose %194, [1, 0] : vector<16x16xf32> -> vector<16x16xf32>
    %cst_91 = arith.constant dense<0.000000e+00> : vector<16x16xf32>
    %197 = tpu.matmul %193, %196, %cst_91 {dimension_numbers = #tpu.dot_dimension_numbers<[1], [0], [0], [1], [0, 0, 1, 1], [], []>} : vector<16x16xf32>, vector<16x16xf32>, vector<16x16xf32> -> vector<16x16xf32>
    %cst_92 = arith.constant 2.500000e-01 : f32
    %198 = vector.broadcast %cst_92 : f32 to vector<16x16xf32>
    %199 = arith.mulf %197, %198 : vector<16x16xf32>
    %200 = arith.addf %199, %25 : vector<16x16xf32>
    %cst_93 = arith.constant dense<0xFF800000> : vector<16xf32>
    %201 = vector.multi_reduction <maximumf>, %200, %cst_93 [1] : vector<16x16xf32> to vector<16xf32>
    %202 = vector.shape_cast %201 : vector<16xf32> to vector<16x1xf32>
    %203 = vector.broadcast %202 : vector<16x1xf32> to vector<16x16xf32>
    %204 = arith.subf %200, %203 : vector<16x16xf32>
    %205 = math.exp %204 : vector<16x16xf32>
    %cst_94 = arith.constant dense<0.000000e+00> : vector<16xf32>
    %206 = vector.multi_reduction <add>, %205, %cst_94 [1] : vector<16x16xf32> to vector<16xf32>
    %207 = vector.shape_cast %206 : vector<16xf32> to vector<16x1xf32>
    %208 = tpu.reciprocal %207 {approx = true} : vector<16x1xf32> -> vector<16x1xf32>
    %209 = vector.broadcast %208 : vector<16x1xf32> to vector<16x16xf32>
    %210 = arith.mulf %205, %209 : vector<16x16xf32>
    %cst_95 = arith.constant dense<0.000000e+00> : vector<16x16xf32>
    %211 = tpu.matmul %210, %195, %cst_95 {dimension_numbers = #tpu.dot_dimension_numbers<[1], [0], [0], [1], [0, 0, 1, 1], [], []>} : vector<16x16xf32>, vector<16x16xf32>, vector<16x16xf32> -> vector<16x16xf32>
    %212 = vector.extract_strided_slice %171 {offsets = [16, 0], sizes = [16, 32], strides = [1, 1]} : vector<32x32xf32> to vector<16x32xf32>
    %cst_96 = arith.constant dense<0.000000e+00> : vector<16x32xf32>
    %213 = tpu.matmul %211, %212, %cst_96 {dimension_numbers = #tpu.dot_dimension_numbers<[1], [0], [0], [1], [0, 0, 1, 1], [], []>} : vector<16x16xf32>, vector<16x32xf32>, vector<16x32xf32> -> vector<16x32xf32>
    %214 = arith.addf %192, %213 : vector<16x32xf32>
    %215 = arith.addf %162, %214 : vector<16x32xf32>
    %c1_97 = arith.constant 1 : index
    %c0_98 = arith.constant 0 : index
    %c0_99 = arith.constant 0 : index
    %216 = vector.load %arg8[%c1_97, %c0_98, %c0_99] : memref<2x1x32xf32, #tpu.memory_space<vmem>>, vector<1x1x32xf32>
    %217 = vector.shape_cast %216 : vector<1x1x32xf32> to vector<1x32xf32>
    %218 = vector.broadcast %217 : vector<1x32xf32> to vector<16x32xf32>
    %219 = arith.addf %215, %218 : vector<16x32xf32>
    %c1_100 = arith.constant 1 : index
    %c0_101 = arith.constant 0 : index
    %c0_102 = arith.constant 0 : index
    %220 = vector.load %arg9[%c1_100, %c0_101, %c0_102] : memref<2x1x32xf32, #tpu.memory_space<vmem>>, vector<1x1x32xf32>
    %221 = vector.shape_cast %220 : vector<1x1x32xf32> to vector<1x32xf32>
    %c1_103 = arith.constant 1 : index
    %c0_104 = arith.constant 0 : index
    %c0_105 = arith.constant 0 : index
    %222 = vector.load %arg10[%c1_103, %c0_104, %c0_105] : memref<2x1x32xf32, #tpu.memory_space<vmem>>, vector<1x1x32xf32>
    %223 = vector.shape_cast %222 : vector<1x1x32xf32> to vector<1x32xf32>
    %cst_106 = arith.constant dense<0.000000e+00> : vector<16xf32>
    %224 = vector.multi_reduction <add>, %219, %cst_106 [1] : vector<16x32xf32> to vector<16xf32>
    %225 = vector.shape_cast %224 : vector<16xf32> to vector<16x1xf32>
    %cst_107 = arith.constant 3.200000e+01 : f32
    %226 = vector.broadcast %cst_107 : f32 to vector<16x1xf32>
    %227 = arith.divf %225, %226 : vector<16x1xf32>
    %228 = vector.broadcast %227 : vector<16x1xf32> to vector<16x32xf32>
    %229 = arith.subf %219, %228 : vector<16x32xf32>
    %230 = arith.mulf %229, %229 : vector<16x32xf32>
    %cst_108 = arith.constant dense<0.000000e+00> : vector<16xf32>
    %231 = vector.multi_reduction <add>, %230, %cst_108 [1] : vector<16x32xf32> to vector<16xf32>
    %232 = vector.shape_cast %231 : vector<16xf32> to vector<16x1xf32>
    %cst_109 = arith.constant 3.200000e+01 : f32
    %233 = vector.broadcast %cst_109 : f32 to vector<16x1xf32>
    %234 = arith.divf %232, %233 : vector<16x1xf32>
    %235 = vector.broadcast %227 : vector<16x1xf32> to vector<16x32xf32>
    %236 = arith.subf %219, %235 : vector<16x32xf32>
    %cst_110 = arith.constant 9.99999996E-13 : f32
    %237 = vector.broadcast %cst_110 : f32 to vector<16x1xf32>
    %238 = arith.addf %234, %237 : vector<16x1xf32>
    %239 = math.rsqrt %238 : vector<16x1xf32>
    %240 = vector.broadcast %239 : vector<16x1xf32> to vector<16x32xf32>
    %241 = arith.mulf %236, %240 : vector<16x32xf32>
    %242 = vector.broadcast %221 : vector<1x32xf32> to vector<16x32xf32>
    %243 = arith.mulf %241, %242 : vector<16x32xf32>
    %244 = vector.broadcast %223 : vector<1x32xf32> to vector<16x32xf32>
    %245 = arith.addf %243, %244 : vector<16x32xf32>
    %c1_111 = arith.constant 1 : index
    %c0_112 = arith.constant 0 : index
    %c0_113 = arith.constant 0 : index
    %246 = vector.load %arg11[%c1_111, %c0_112, %c0_113] : memref<2x32x64xf32, #tpu.memory_space<vmem>>, vector<1x32x64xf32>
    %247 = vector.shape_cast %246 : vector<1x32x64xf32> to vector<32x64xf32>
    %cst_114 = arith.constant dense<0.000000e+00> : vector<16x64xf32>
    %248 = tpu.matmul %245, %247, %cst_114 {dimension_numbers = #tpu.dot_dimension_numbers<[1], [0], [0], [1], [0, 0, 1, 1], [], []>} : vector<16x32xf32>, vector<32x64xf32>, vector<16x64xf32> -> vector<16x64xf32>
    %c1_115 = arith.constant 1 : index
    %c0_116 = arith.constant 0 : index
    %c0_117 = arith.constant 0 : index
    %249 = vector.load %arg12[%c1_115, %c0_116, %c0_117] : memref<2x1x64xf32, #tpu.memory_space<vmem>>, vector<1x1x64xf32>
    %250 = vector.shape_cast %249 : vector<1x1x64xf32> to vector<1x64xf32>
    %251 = vector.broadcast %250 : vector<1x64xf32> to vector<16x64xf32>
    %252 = arith.addf %248, %251 : vector<16x64xf32>
    %cst_118 = arith.constant 5.000000e-01 : f32
    %253 = vector.broadcast %cst_118 : f32 to vector<16x64xf32>
    %254 = arith.mulf %253, %252 : vector<16x64xf32>
    %cst_119 = arith.constant 4.471500e-02 : f32
    %255 = vector.broadcast %cst_119 : f32 to vector<16x64xf32>
    %256 = arith.mulf %255, %252 : vector<16x64xf32>
    %257 = arith.mulf %256, %252 : vector<16x64xf32>
    %258 = arith.mulf %257, %252 : vector<16x64xf32>
    %259 = arith.addf %252, %258 : vector<16x64xf32>
    %cst_120 = arith.constant 0.797884583 : f32
    %260 = vector.broadcast %cst_120 : f32 to vector<16x64xf32>
    %261 = arith.mulf %260, %259 : vector<16x64xf32>
    %262 = math.tanh %261 : vector<16x64xf32>
    %cst_121 = arith.constant 1.000000e+00 : f32
    %263 = vector.broadcast %cst_121 : f32 to vector<16x64xf32>
    %264 = arith.addf %263, %262 : vector<16x64xf32>
    %265 = arith.mulf %254, %264 : vector<16x64xf32>
    %c1_122 = arith.constant 1 : index
    %c0_123 = arith.constant 0 : index
    %c0_124 = arith.constant 0 : index
    %266 = vector.load %arg13[%c1_122, %c0_123, %c0_124] : memref<2x64x32xf32, #tpu.memory_space<vmem>>, vector<1x64x32xf32>
    %267 = vector.shape_cast %266 : vector<1x64x32xf32> to vector<64x32xf32>
    %cst_125 = arith.constant dense<0.000000e+00> : vector<16x32xf32>
    %268 = tpu.matmul %265, %267, %cst_125 {dimension_numbers = #tpu.dot_dimension_numbers<[1], [0], [0], [1], [0, 0, 1, 1], [], []>} : vector<16x64xf32>, vector<64x32xf32>, vector<16x32xf32> -> vector<16x32xf32>
    %c1_126 = arith.constant 1 : index
    %c0_127 = arith.constant 0 : index
    %c0_128 = arith.constant 0 : index
    %269 = vector.load %arg14[%c1_126, %c0_127, %c0_128] : memref<2x1x32xf32, #tpu.memory_space<vmem>>, vector<1x1x32xf32>
    %270 = vector.shape_cast %269 : vector<1x1x32xf32> to vector<1x32xf32>
    %271 = vector.broadcast %270 : vector<1x32xf32> to vector<16x32xf32>
    %272 = arith.addf %268, %271 : vector<16x32xf32>
    %273 = arith.addf %245, %272 : vector<16x32xf32>
    %c1_129 = arith.constant 1 : index
    %c0_130 = arith.constant 0 : index
    %c0_131 = arith.constant 0 : index
    %274 = vector.load %arg15[%c1_129, %c0_130, %c0_131] : memref<2x1x32xf32, #tpu.memory_space<vmem>>, vector<1x1x32xf32>
    %275 = vector.shape_cast %274 : vector<1x1x32xf32> to vector<1x32xf32>
    %c1_132 = arith.constant 1 : index
    %c0_133 = arith.constant 0 : index
    %c0_134 = arith.constant 0 : index
    %276 = vector.load %arg16[%c1_132, %c0_133, %c0_134] : memref<2x1x32xf32, #tpu.memory_space<vmem>>, vector<1x1x32xf32>
    %277 = vector.shape_cast %276 : vector<1x1x32xf32> to vector<1x32xf32>
    %cst_135 = arith.constant dense<0.000000e+00> : vector<16xf32>
    %278 = vector.multi_reduction <add>, %273, %cst_135 [1] : vector<16x32xf32> to vector<16xf32>
    %279 = vector.shape_cast %278 : vector<16xf32> to vector<16x1xf32>
    %cst_136 = arith.constant 3.200000e+01 : f32
    %280 = vector.broadcast %cst_136 : f32 to vector<16x1xf32>
    %281 = arith.divf %279, %280 : vector<16x1xf32>
    %282 = vector.broadcast %281 : vector<16x1xf32> to vector<16x32xf32>
    %283 = arith.subf %273, %282 : vector<16x32xf32>
    %284 = arith.mulf %283, %283 : vector<16x32xf32>
    %cst_137 = arith.constant dense<0.000000e+00> : vector<16xf32>
    %285 = vector.multi_reduction <add>, %284, %cst_137 [1] : vector<16x32xf32> to vector<16xf32>
    %286 = vector.shape_cast %285 : vector<16xf32> to vector<16x1xf32>
    %cst_138 = arith.constant 3.200000e+01 : f32
    %287 = vector.broadcast %cst_138 : f32 to vector<16x1xf32>
    %288 = arith.divf %286, %287 : vector<16x1xf32>
    %289 = vector.broadcast %281 : vector<16x1xf32> to vector<16x32xf32>
    %290 = arith.subf %273, %289 : vector<16x32xf32>
    %cst_139 = arith.constant 9.99999996E-13 : f32
    %291 = vector.broadcast %cst_139 : f32 to vector<16x1xf32>
    %292 = arith.addf %288, %291 : vector<16x1xf32>
    %293 = math.rsqrt %292 : vector<16x1xf32>
    %294 = vector.broadcast %293 : vector<16x1xf32> to vector<16x32xf32>
    %295 = arith.mulf %290, %294 : vector<16x32xf32>
    %296 = vector.broadcast %275 : vector<1x32xf32> to vector<16x32xf32>
    %297 = arith.mulf %295, %296 : vector<16x32xf32>
    %298 = vector.broadcast %277 : vector<1x32xf32> to vector<16x32xf32>
    %299 = arith.addf %297, %298 : vector<16x32xf32>
    %c0_140 = arith.constant 0 : index
    %c0_141 = arith.constant 0 : index
    %300 = vector.load %arg17[%c0_140, %c0_141] : memref<16x32xf32, #tpu.memory_space<vmem>>, vector<16x32xf32>
    tpu.vector_store %arg17[%c0_140, %c0_141], %299 {strides = array<i32>} : memref<16x32xf32, #tpu.memory_space<vmem>>, vector<16x32xf32>,
    return
  }
  func.func @transform_0(%arg0: i32) -> (i32, i32) {
    %c0_i32 = arith.constant 0 : i32
    %c0_i32_0 = arith.constant 0 : i32
    %c0_i32_1 = arith.constant 0 : i32
    return %c0_i32, %c0_i32_0 : i32, i32
  }
  func.func @transform_1(%arg0: i32) -> (i32, i32) {
    %c0_i32 = arith.constant 0 : i32
    %c0_i32_0 = arith.constant 0 : i32
    %c0_i32_1 = arith.constant 0 : i32
    return %c0_i32, %c0_i32_0 : i32, i32
  }
  func.func @transform_2(%arg0: i32) -> (i32, i32) {
    %c0_i32 = arith.constant 0 : i32
    %c0_i32_0 = arith.constant 0 : i32
    %c0_i32_1 = arith.constant 0 : i32
    return %c0_i32, %c0_i32_0 : i32, i32
  }
  func.func @transform_3(%arg0: i32) -> (i32, i32) {
    %c0_i32 = arith.constant 0 : i32
    %c0_i32_0 = arith.constant 0 : i32
    %c0_i32_1 = arith.constant 0 : i32
    return %c0_i32, %c0_i32_0 : i32, i32
  }
  func.func @transform_4(%arg0: i32) -> (i32, i32, i32) {
    %c0_i32 = arith.constant 0 : i32
    %c0_i32_0 = arith.constant 0 : i32
    %c0_i32_1 = arith.constant 0 : i32
    %c0_i32_2 = arith.constant 0 : i32
    return %c0_i32, %c0_i32_0, %c0_i32_1 : i32, i32, i32
  }
  func.func @transform_5(%arg0: i32) -> (i32, i32, i32) {
    %c0_i32 = arith.constant 0 : i32
    %c0_i32_0 = arith.constant 0 : i32
    %c0_i32_1 = arith.constant 0 : i32
    %c0_i32_2 = arith.constant 0 : i32
    return %c0_i32, %c0_i32_0, %c0_i32_1 : i32, i32, i32
  }
  func.func @transform_6(%arg0: i32) -> (i32, i32, i32) {
    %c0_i32 = arith.constant 0 : i32
    %c0_i32_0 = arith.constant 0 : i32
    %c0_i32_1 = arith.constant 0 : i32
    %c0_i32_2 = arith.constant 0 : i32
    return %c0_i32, %c0_i32_0, %c0_i32_1 : i32, i32, i32
  }
  func.func @transform_7(%arg0: i32) -> (i32, i32, i32) {
    %c0_i32 = arith.constant 0 : i32
    %c0_i32_0 = arith.constant 0 : i32
    %c0_i32_1 = arith.constant 0 : i32
    %c0_i32_2 = arith.constant 0 : i32
    return %c0_i32, %c0_i32_0, %c0_i32_1 : i32, i32, i32
  }
  func.func @transform_8(%arg0: i32) -> (i32, i32, i32) {
    %c0_i32 = arith.constant 0 : i32
    %c0_i32_0 = arith.constant 0 : i32
    %c0_i32_1 = arith.constant 0 : i32
    %c0_i32_2 = arith.constant 0 : i32
    return %c0_i32, %c0_i32_0, %c0_i32_1 : i32, i32, i32
  }
  func.func @transform_9(%arg0: i32) -> (i32, i32, i32) {
    %c0_i32 = arith.constant 0 : i32
    %c0_i32_0 = arith.constant 0 : i32
    %c0_i32_1 = arith.constant 0 : i32
    %c0_i32_2 = arith.constant 0 : i32
    return %c0_i32, %c0_i32_0, %c0_i32_1 : i32, i32, i32
  }
  func.func @transform_10(%arg0: i32) -> (i32, i32, i32) {
    %c0_i32 = arith.constant 0 : i32
    %c0_i32_0 = arith.constant 0 : i32
    %c0_i32_1 = arith.constant 0 : i32
    %c0_i32_2 = arith.constant 0 : i32
    return %c0_i32, %c0_i32_0, %c0_i32_1 : i32, i32, i32
  }
  func.func @transform_11(%arg0: i32) -> (i32, i32, i32) {
    %c0_i32 = arith.constant 0 : i32
    %c0_i32_0 = arith.constant 0 : i32
    %c0_i32_1 = arith.constant 0 : i32
    %c0_i32_2 = arith.constant 0 : i32
    return %c0_i32, %c0_i32_0, %c0_i32_1 : i32, i32, i32
  }
  func.func @transform_12(%arg0: i32) -> (i32, i32, i32) {
    %c0_i32 = arith.constant 0 : i32
    %c0_i32_0 = arith.constant 0 : i32
    %c0_i32_1 = arith.constant 0 : i32
    %c0_i32_2 = arith.constant 0 : i32
    return %c0_i32, %c0_i32_0, %c0_i32_1 : i32, i32, i32
  }
  func.func @transform_13(%arg0: i32) -> (i32, i32, i32) {
    %c0_i32 = arith.constant 0 : i32
    %c0_i32_0 = arith.constant 0 : i32
    %c0_i32_1 = arith.constant 0 : i32
    %c0_i32_2 = arith.constant 0 : i32
    return %c0_i32, %c0_i32_0, %c0_i32_1 : i32, i32, i32
  }
  func.func @transform_14(%arg0: i32) -> (i32, i32, i32) {
    %c0_i32 = arith.constant 0 : i32
    %c0_i32_0 = arith.constant 0 : i32
    %c0_i32_1 = arith.constant 0 : i32
    %c0_i32_2 = arith.constant 0 : i32
    return %c0_i32, %c0_i32_0, %c0_i32_1 : i32, i32, i32
  }
  func.func @transform_15(%arg0: i32) -> (i32, i32, i32) {
    %c0_i32 = arith.constant 0 : i32
    %c0_i32_0 = arith.constant 0 : i32
    %c0_i32_1 = arith.constant 0 : i32
    %c0_i32_2 = arith.constant 0 : i32
    return %c0_i32, %c0_i32_0, %c0_i32_1 : i32, i32, i32
  }
  func.func @transform_16(%arg0: i32) -> (i32, i32) {
    %c0_i32 = arith.constant 0 : i32
    %c0_i32_0 = arith.constant 0 : i32
    %c0_i32_1 = arith.constant 0 : i32
    return %c0_i32, %c0_i32_0 : i32, i32
  }
}

</mosaic_0001>

<llo_original>
// kernel: mul.8
$region0: #{mul.8}
  %s0 = inlined_call_operand.vmem [shape: f32[2,8], index: 0, kind: input, shape index: {}]
  %s1 = inlined_call_operand.vmem [shape: f32[16], index: 1, kind: output, shape index: {}]
  $region1: #{mul.8} parent=0
    #allocation0 [shape = 'u8[4096]{0}', space=vmem, size = 0x1000, scoped, tag = 'scoped mem for output reshape']
    #allocation1 [shape = 'u8[4096]{0}', space=vmem, size = 0x1000, scoped, tag = 'scoped mem for input reshape']
    %s3 = ssub.s32 4, 1
    %v4 = vld [vmem:[%s0] sm:%s3]
    %5 = vst [vmem:[#allocation1] sm:%s3] %v4
    %v6 = vld [vmem:[#allocation1] sm:$0x1]
    %vm7 = vcmask 64512
    %8 = vst.msk [vmem:[#allocation0] sm:$0x1] %vm7, %v6
    %s9 = scalar_lea.vmem [#allocation1], 1
    %v10 = vld [vmem:[%s9] sm:$0x1]
    %11 = vrot.lane.b32.xlu0 %v10, 8
    %v12 = vpop.permute.xlu0 %11
    %vm13 = vcmask 130112
    %14 = vst.msk [vmem:[#allocation0] sm:$0x1] %vm13, %v12
    %s16 = ssub.s32 2, 1
    %v17 = vld [vmem:[#allocation0] sm:%s16]
    %s19 = ssub.s32 2, 1
    %20 = vst [vmem:[%s1] sm:%s19] %v17

// kernel: model_forward.1
$region0: #{model_forward.1}
  #allocation0 [shape = 'u32[]', space=smem, size = 0x4, offset = 0x4, fixed_abs, tag = 'smem constant byte address 0x4 - core index']
  #allocation1 [shape = 'u32[72,128]{1,0:T(1,128)}', space=vmem, size = 0x9000, scoped, tag = 'internal scratch']
  %s0 = inlined_call_operand.vmem [shape: f32[16,32], index: 0, kind: input, shape index: {}]
  %s1 = inlined_call_operand.vmem [shape: f32[16,16], index: 1, kind: input, shape index: {}]
  %s2 = inlined_call_operand.vmem [shape: f32[1,32], index: 2, kind: input, shape index: {}]
  %s3 = inlined_call_operand.vmem [shape: f32[1,32], index: 3, kind: input, shape index: {}]
  %s4 = inlined_call_operand.vmem [shape: f32[2,32,96], index: 4, kind: input, shape index: {}]
  %s5 = inlined_call_operand.vmem [shape: f32[2,1,96], index: 5, kind: input, shape index: {}]
  %s6 = inlined_call_operand.vmem [shape: f32[2,32,32], index: 6, kind: input, shape index: {}]
  %s7 = inlined_call_operand.vmem [shape: f32[2,1,32], index: 7, kind: input, shape index: {}]
  %s8 = inlined_call_operand.vmem [shape: f32[2,1,32], index: 8, kind: input, shape index: {}]
  %s9 = inlined_call_operand.vmem [shape: f32[2,1,32], index: 9, kind: input, shape index: {}]
  %s10 = inlined_call_operand.vmem [shape: f32[2,32,64], index: 10, kind: input, shape index: {}]
  %s11 = inlined_call_operand.vmem [shape: f32[2,1,64], index: 11, kind: input, shape index: {}]
  %s12 = inlined_call_operand.vmem [shape: f32[2,64,32], index: 12, kind: input, shape index: {}]
  %s13 = inlined_call_operand.vmem [shape: f32[2,1,32], index: 13, kind: input, shape index: {}]
  %s14 = inlined_call_operand.vmem [shape: f32[2,1,32], index: 14, kind: input, shape index: {}]
  %s15 = inlined_call_operand.vmem [shape: f32[2,1,32], index: 15, kind: input, shape index: {}]
  %s16 = inlined_call_operand.hbm [shape: f32[16,32], index: 16, kind: output, shape index: {}]
  %s17 = sld [smem:[#allocation0]]
  $region74: #{model_forward.1} parent=0
    _
  %s19 = ssub.s32 1, %s17
  %s20 = scalar_select 0, %s19, %s17
  $region1: #{model_forward.1} parent=0
    #allocation2 [shape = 'u8[8192]{0}', space=vmem, size = 0x2000, scoped, tag = 'output window, operand 0, single buffered']
    #allocation3 [shape = 's32[1]{0}', space=sflag, size = 0x4, scoped, tag = 'scoped memory for model_forward.1']
    %21 = vsyncpa [#allocation3], 0
    // Predicated region
    $region2: #{model_forward.1} parent=1 // pred_check
      _
    $region3: #{model_forward.1} parent=1 // pred_check_branch
      %23 = sbr.rel (0) target = $region5
    $region4: #{model_forward.1} parent=1 // pred_region
      _
    $region5: #{model_forward.1} parent=1 // pred_fallthru
      _
    // Predicated region
    $region6: #{model_forward.1} parent=1 // pred_check
      _
    $region7: #{model_forward.1} parent=1 // pred_check_branch
      %25 = sbr.rel (0) target = $region9
    $region8: #{model_forward.1} parent=1 // pred_region
      _
    $region9: #{model_forward.1} parent=1 // pred_fallthru
      _
    // Predicated region
    $region10: #{model_forward.1} parent=1 // pred_check
      _
    $region11: #{model_forward.1} parent=1 // pred_check_branch
      %27 = sbr.rel (0) target = $region13
    $region12: #{model_forward.1} parent=1 // pred_region
      _
    $region13: #{model_forward.1} parent=1 // pred_fallthru
      _
    // Predicated region
    $region14: #{model_forward.1} parent=1 // pred_check
      _
    $region15: #{model_forward.1} parent=1 // pred_check_branch
      %29 = sbr.rel (0) target = $region17
    $region16: #{model_forward.1} parent=1 // pred_region
      _
    $region17: #{model_forward.1} parent=1 // pred_fallthru
      _
    // Predicated region
    $region18: #{model_forward.1} parent=1 // pred_check
      _
    $region19: #{model_forward.1} parent=1 // pred_check_branch
      %31 = sbr.rel (0) target = $region21
    $region20: #{model_forward.1} parent=1 // pred_region
      _
    $region21: #{model_forward.1} parent=1 // pred_fallthru
      _
    // Predicated region
    $region22: #{model_forward.1} parent=1 // pred_check
      _
    $region23: #{model_forward.1} parent=1 // pred_check_branch
      %33 = sbr.rel (0) target = $region25
    $region24: #{model_forward.1} parent=1 // pred_region
      _
    $region25: #{model_forward.1} parent=1 // pred_fallthru
      _
    // Predicated region
    $region26: #{model_forward.1} parent=1 // pred_check
      _
    $region27: #{model_forward.1} parent=1 // pred_check_branch
      %35 = sbr.rel (0) target = $region29
    $region28: #{model_forward.1} parent=1 // pred_region
      _
    $region29: #{model_forward.1} parent=1 // pred_fallthru
      _
    // Predicated region
    $region30: #{model_forward.1} parent=1 // pred_check
      _
    $region31: #{model_forward.1} parent=1 // pred_check_branch
      %37 = sbr.rel (0) target = $region33
    $region32: #{model_forward.1} parent=1 // pred_region
      _
    $region33: #{model_forward.1} parent=1 // pred_fallthru
      _
    // Predicated region
    $region34: #{model_forward.1} parent=1 // pred_check
      _
    $region35: #{model_forward.1} parent=1 // pred_check_branch
      %39 = sbr.rel (0) target = $region37
    $region36: #{model_forward.1} parent=1 // pred_region
      _
    $region37: #{model_forward.1} parent=1 // pred_fallthru
      _
    // Predicated region
    $region38: #{model_forward.1} parent=1 // pred_check
      _
    $region39: #{model_forward.1} parent=1 // pred_check_branch
      %41 = sbr.rel (0) target = $region41
    $region40: #{model_forward.1} parent=1 // pred_region
      _
    $region41: #{model_forward.1} parent=1 // pred_fallthru
      _
    // Predicated region
    $region42: #{model_forward.1} parent=1 // pred_check
      _
    $region43: #{model_forward.1} parent=1 // pred_check_branch
      %43 = sbr.rel (0) target = $region45
    $region44: #{model_forward.1} parent=1 // pred_region
      _
    $region45: #{model_forward.1} parent=1 // pred_fallthru
      _
    // Predicated region
    $region46: #{model_forward.1} parent=1 // pred_check
      _
    $region47: #{model_forward.1} parent=1 // pred_check_branch
      %45 = sbr.rel (0) target = $region49
    $region48: #{model_forward.1} parent=1 // pred_region
      _
    $region49: #{model_forward.1} parent=1 // pred_fallthru
      _
    // Predicated region
    $region50: #{model_forward.1} parent=1 // pred_check
      _
    $region51: #{model_forward.1} parent=1 // pred_check_branch
      %47 = sbr.rel (0) target = $region53
    $region52: #{model_forward.1} parent=1 // pred_region
      _
    $region53: #{model_forward.1} parent=1 // pred_fallthru
      _
    // Predicated region
    $region54: #{model_forward.1} parent=1 // pred_check
      _
    $region55: #{model_forward.1} parent=1 // pred_check_branch
      %49 = sbr.rel (0) target = $region57
    $region56: #{model_forward.1} parent=1 // pred_region
      _
    $region57: #{model_forward.1} parent=1 // pred_fallthru
      _
    // Predicated region
    $region58: #{model_forward.1} parent=1 // pred_check
      _
    $region59: #{model_forward.1} parent=1 // pred_check_branch
      %51 = sbr.rel (0) target = $region61
    $region60: #{model_forward.1} parent=1 // pred_region
      _
    $region61: #{model_forward.1} parent=1 // pred_fallthru
      _
    // Predicated region
    $region62: #{model_forward.1} parent=1 // pred_check
      _
    $region63: #{model_forward.1} parent=1 // pred_check_branch
      %53 = sbr.rel (0) target = $region65
    $region64: #{model_forward.1} parent=1 // pred_region
      _
    $region65: #{model_forward.1} parent=1 // pred_fallthru
      _
    %v54 = vld [vmem:[%s0] sm:$0xff]
    %v55 = vld [vmem:[%s0 + $0x8] sm:$0xff]
    %v56 = vld [vmem:[%s2] sm:$0x1]
    %v57 = vld [vmem:[%s3] sm:$0x1]
    %vm58 = vcmask 261120
    %v59 = vsel %vm58, %v54, 0.0
    %60 = vadd.xlane.f32.xlu0 %v59
    %v61 = vpop.xlane.xlu0 %60
    %v62 = vsel %vm58, %v55, 0.0
    %63 = vadd.xlane.f32.xlu0 %v62
    %v64 = vpop.xlane.xlu0 %63
    %v65 = vrcp.pop 32.0
    %v66 = vmul.f32 32.0, %v65
    %v67 = vsub.f32 1.0, %v66
    %v68 = vmul.f32 %v65, %v67
    %v69 = vadd.f32 %v65, %v68
    %vm70 = vweird.f32 %v65
    %v71 = vsel %vm70, %v65, %v69
    %v72 = vmul.f32 %v61, %v71
    %v73 = vmul.f32 %v64, %v71
    %v74 = vsub.f32 %v54, %v72
    %v75 = vsub.f32 %v55, %v73
    %v76 = vmul.f32 %v74, %v74
    %v77 = vmul.f32 %v75, %v75
    %v78 = vsel %vm58, %v76, 0.0
    %79 = vadd.xlane.f32.xlu0 %v78
    %v80 = vpop.xlane.xlu0 %79
    %v81 = vsel %vm58, %v77, 0.0
    %82 = vadd.xlane.f32.xlu0 %v81
    %v83 = vpop.xlane.xlu0 %82
    %v84 = vmul.f32 %v80, %v71
    %v85 = vmul.f32 %v83, %v71
    %v86 = vadd.f32 %v84, 1e-12
    %v87 = vadd.f32 %v85, 1e-12
    %v88 = vrsqrt.pop %v86
    %v89 = vmul.f32 %v88, %v86
    %v90 = vmul.f32 %v89, %v88
    %v91 = vmul.f32 0.5, %v90
    %v92 = vsub.f32 1.5, %v91
    %v93 = vmul.f32 %v88, %v92
    %vm94 = vweird.f32 %v86
    %vm95 = vweird.f32 %v88
    %vm96 = vmor %vm94, %vm95
    %v97 = vsel %vm96, %v88, %v93
    %v98 = vrsqrt.pop %v87
    %v99 = vmul.f32 %v98, %v87
    %v100 = vmul.f32 %v99, %v98
    %v101 = vmul.f32 0.5, %v100
    %v102 = vsub.f32 1.5, %v101
    %v103 = vmul.f32 %v98, %v102
    %vm104 = vweird.f32 %v87
    %vm105 = vweird.f32 %v98
    %vm106 = vmor %vm104, %vm105
    %v107 = vsel %vm106, %v98, %v103
    %v108 = vmul.f32 %v74, %v97
    %v109 = vmul.f32 %v75, %v107
    %v111 = vperm.slane %v56, 0
    %v113 = vmul.f32 %v108, %v111
    %v114 = vmul.f32 %v109, %v111
    %v116 = vperm.slane %v57, 0
    %v118 = vadd.f32 %v113, %v116
    %v119 = vadd.f32 %v114, %v116
    %v120 = vld [vmem:[%s1] sm:$0xff]
    %v121 = vld [vmem:[%s1 + $0x8] sm:$0xff]
    %v122 = vld [vmem:[%s4] sm:$0xff]
    %v123 = vld [vmem:[%s4 + $0x8] sm:$0xff]
    %v124 = vld [vmem:[%s4 + $0x10] sm:$0xff]
    %v125 = vld [vmem:[%s4 + $0x18] sm:$0xff]
    %v126 = vld [vmem:[%s5] sm:$0x1]
    %v128 = vperm.slane %v126, 0
    %v131 = vsel %vm58, %v118, 0
    %v134 = vsel %vm58, %v119, 0
    %136 = vmatpush.msra.mxu0 0.0
    %137 = vmatpush.msra.mxu0 0.0
    %138 = vmatpush.msra.mxu0 0.0
    %139 = vmatpush.msra.mxu0 0.0
    %140 = vmatpush.msra.mxu0 0.0
    %141 = vmatpush.msra.mxu0 0.0
    %142 = vmatpush.msra.mxu0 0.0
    %143 = vmatpush.msra.mxu0 0.0
    %144 = vmatpush.msra.mxu0 0.0
    %145 = vmatpush.msra.mxu0 0.0
    %146 = vmatpush.msra.mxu0 0.0
    %147 = vmatpush.msra.mxu0 0.0
    %148 = vmatpush.msra.mxu0 %v125
    %149 = vmatpush.msra.mxu0 %v124
    %150 = vmatpush.msra.mxu0 %v123
    %151 = vmatpush.msra.mxu0 %v122
    %152 = vmatmul.f32.gmra.mxu0 %v131
    %v153 = vpop.f32.mrf.mxu0
    %v154 = vadd.f32 %v128, %v153
    %155 = vmatmul.f32.gmra.mxu0 %v134
    %v156 = vpop.f32.mrf.mxu0
    %v157 = vadd.f32 %v128, %v156
    %158 = vdwg.mxu0
    %v159 = vld [vmem:[%s6] sm:$0xff]
    %v160 = vld [vmem:[%s6 + $0x8] sm:$0xff]
    %v161 = vld [vmem:[%s6 + $0x10] sm:$0xff]
    %v162 = vld [vmem:[%s6 + $0x18] sm:$0xff]
    %165 = vrot.lane.b32.xlu0 %v154, 96
    %v166 = vpop.permute.xlu0 %165
    %167 = vrot.lane.b32.xlu0 %v157, 96
    %v168 = vpop.permute.xlu0 %167
    %vm169 = vcmask 130048
    %v170 = vsel %vm169, %v154, 0
    %v172 = vsel %vm169, %v157, 0
    %v174 = vsel %vm169, %v166, 0
    %v176 = vsel %vm169, %v168, 0
    %178 = vmatpush.xpose.msra.mxu0 0.0
    %179 = vmatpush.xpose.msra.mxu0 0.0
    %180 = vmatpush.xpose.msra.mxu0 0.0
    %181 = vmatpush.xpose.msra.mxu0 0.0
    %182 = vmatpush.xpose.msra.mxu0 0.0
    %183 = vmatpush.xpose.msra.mxu0 0.0
    %184 = vmatpush.xpose.msra.mxu0 0.0
    %185 = vmatpush.xpose.msra.mxu0 0.0
    %186 = vmatpush.xpose.msra.mxu0 0.0
    %187 = vmatpush.xpose.msra.mxu0 0.0
    %188 = vmatpush.xpose.msra.mxu0 0.0
    %189 = vmatpush.xpose.msra.mxu0 0.0
    %190 = vmatpush.xpose.msra.mxu0 0.0
    %191 = vmatpush.xpose.msra.mxu0 0.0
    %192 = vmatpush.xpose.msra.mxu0 %v176
    %193 = vmatpush.xpose.msra.mxu0 %v174
    %194 = vmatmul.f32.gmra.mxu0 %v170
    %v195 = vpop.f32.mrf.mxu0
    %v196 = vadd.f32 0.0, %v195
    %197 = vmatmul.f32.gmra.mxu0 %v172
    %v198 = vpop.f32.mrf.mxu0
    %v199 = vadd.f32 0.0, %v198
    %200 = vdwg.mxu0
    %v201 = vmul.f32 %v196, 0.25
    %v202 = vmul.f32 %v199, 0.25
    %v203 = vadd.f32 %v201, %v120
    %v204 = vadd.f32 %v202, %v121
    %v205 = vsel %vm169, %v203, -inf
    %206 = vmax.xlane.f32.xlu0 %v205
    %v207 = vpop.xlane.xlu0 %206
    %v208 = vsel %vm169, %v204, -inf
    %209 = vmax.xlane.f32.xlu0 %v208
    %v210 = vpop.xlane.xlu0 %209
    %v211 = vsub.f32 %v203, %v207
    %v212 = vsub.f32 %v204, %v210
    %v213 = vmul.f32 %v211, 1.442695
    %v214 = vpow.pop %v213
    %v215 = vmul.f32 %v212, 1.442695
    %v216 = vpow.pop %v215
    %v217 = vsel %vm169, %v214, 0.0
    %218 = vadd.xlane.f32.xlu0 %v217
    %v219 = vpop.xlane.xlu0 %218
    %v220 = vsel %vm169, %v216, 0.0
    %221 = vadd.xlane.f32.xlu0 %v220
    %v222 = vpop.xlane.xlu0 %221
    %v223 = vrcp.pop %v219
    %v224 = vrcp.pop %v222
    %v225 = vmul.f32 %v214, %v223
    %v226 = vmul.f32 %v216, %v224
    %227 = vrot.lane.b32.xlu0 %v154, 64
    %v228 = vpop.permute.xlu0 %227
    %229 = vrot.lane.b32.xlu0 %v157, 64
    %v230 = vpop.permute.xlu0 %229
    %v234 = vsel %vm169, %v225, 0
    %v237 = vsel %vm169, %v226, 0
    %239 = vmatpush.msra.mxu0 0.0
    %240 = vmatpush.msra.mxu0 0.0
    %241 = vmatpush.msra.mxu0 0.0
    %242 = vmatpush.msra.mxu0 0.0
    %243 = vmatpush.msra.mxu0 0.0
    %244 = vmatpush.msra.mxu0 0.0
    %245 = vmatpush.msra.mxu0 0.0
    %246 = vmatpush.msra.mxu0 0.0
    %247 = vmatpush.msra.mxu0 0.0
    %248 = vmatpush.msra.mxu0 0.0
    %249 = vmatpush.msra.mxu0 0.0
    %250 = vmatpush.msra.mxu0 0.0
    %251 = vmatpush.msra.mxu0 0.0
    %252 = vmatpush.msra.mxu0 0.0
    %253 = vmatpush.msra.mxu0 %v230
    %254 = vmatpush.msra.mxu0 %v228
    %255 = vmatmul.f32.gmra.mxu0 %v234
    %v256 = vpop.f32.mrf.mxu0
    %v257 = vadd.f32 0.0, %v256
    %258 = vmatmul.f32.gmra.mxu0 %v237
    %v259 = vpop.f32.mrf.mxu0
    %v260 = vadd.f32 0.0, %v259
    %261 = vdwg.mxu0
    %262 = vrot.lane.b32.xlu0 %v154, 112
    %v263 = vpop.permute.xlu0 %262
    %264 = vrot.lane.b32.xlu0 %v157, 112
    %v265 = vpop.permute.xlu0 %264
    %266 = vrot.lane.b32.xlu0 %v154, 80
    %v267 = vpop.permute.xlu0 %266
    %268 = vrot.lane.b32.xlu0 %v157, 80
    %v269 = vpop.permute.xlu0 %268
    %v270 = vsel %vm169, %v263, 0
    %v272 = vsel %vm169, %v265, 0
    %v274 = vsel %vm169, %v267, 0
    %v276 = vsel %vm169, %v269, 0
    %278 = vmatpush.xpose.msra.mxu0 0.0
    %279 = vmatpush.xpose.msra.mxu0 0.0
    %280 = vmatpush.xpose.msra.mxu0 0.0
    %281 = vmatpush.xpose.msra.mxu0 0.0
    %282 = vmatpush.xpose.msra.mxu0 0.0
    %283 = vmatpush.xpose.msra.mxu0 0.0
    %284 = vmatpush.xpose.msra.mxu0 0.0
    %285 = vmatpush.xpose.msra.mxu0 0.0
    %286 = vmatpush.xpose.msra.mxu0 0.0
    %287 = vmatpush.xpose.msra.mxu0 0.0
    %288 = vmatpush.xpose.msra.mxu0 0.0
    %289 = vmatpush.xpose.msra.mxu0 0.0
    %290 = vmatpush.xpose.msra.mxu0 0.0
    %291 = vmatpush.xpose.msra.mxu0 0.0
    %292 = vmatpush.xpose.msra.mxu0 %v276
    %293 = vmatpush.xpose.msra.mxu0 %v274
    %294 = vmatmul.f32.gmra.mxu0 %v270
    %v295 = vpop.f32.mrf.mxu0
    %v296 = vadd.f32 0.0, %v295
    %297 = vmatmul.f32.gmra.mxu0 %v272
    %v298 = vpop.f32.mrf.mxu0
    %v299 = vadd.f32 0.0, %v298
    %300 = vdwg.mxu0
    %v301 = vmul.f32 %v296, 0.25
    %v302 = vmul.f32 %v299, 0.25
    %v303 = vadd.f32 %v301, %v120
    %v304 = vadd.f32 %v302, %v121
    %v305 = vsel %vm169, %v303, -inf
    %306 = vmax.xlane.f32.xlu0 %v305
    %v307 = vpop.xlane.xlu0 %306
    %v308 = vsel %vm169, %v304, -inf
    %309 = vmax.xlane.f32.xlu0 %v308
    %v310 = vpop.xlane.xlu0 %309
    %v311 = vsub.f32 %v303, %v307
    %v312 = vsub.f32 %v304, %v310
    %v313 = vmul.f32 %v311, 1.442695
    %v314 = vpow.pop %v313
    %v315 = vmul.f32 %v312, 1.442695
    %v316 = vpow.pop %v315
    %v317 = vsel %vm169, %v314, 0.0
    %318 = vadd.xlane.f32.xlu0 %v317
    %v319 = vpop.xlane.xlu0 %318
    %v320 = vsel %vm169, %v316, 0.0
    %321 = vadd.xlane.f32.xlu0 %v320
    %v322 = vpop.xlane.xlu0 %321
    %v323 = vrcp.pop %v319
    %v324 = vrcp.pop %v322
    %v325 = vmul.f32 %v314, %v323
    %v326 = vmul.f32 %v316, %v324
    %327 = vrot.lane.b32.xlu0 %v154, 48
    %v328 = vpop.permute.xlu0 %327
    %329 = vrot.lane.b32.xlu0 %v157, 48
    %v330 = vpop.permute.xlu0 %329
    %v334 = vsel %vm169, %v325, 0
    %v337 = vsel %vm169, %v326, 0
    %339 = vmatpush.msra.mxu0 0.0
    %340 = vmatpush.msra.mxu0 0.0
    %341 = vmatpush.msra.mxu0 0.0
    %342 = vmatpush.msra.mxu0 0.0
    %343 = vmatpush.msra.mxu0 0.0
    %344 = vmatpush.msra.mxu0 0.0
    %345 = vmatpush.msra.mxu0 0.0
    %346 = vmatpush.msra.mxu0 0.0
    %347 = vmatpush.msra.mxu0 0.0
    %348 = vmatpush.msra.mxu0 0.0
    %349 = vmatpush.msra.mxu0 0.0
    %350 = vmatpush.msra.mxu0 0.0
    %351 = vmatpush.msra.mxu0 0.0
    %352 = vmatpush.msra.mxu0 0.0
    %353 = vmatpush.msra.mxu0 %v330
    %354 = vmatpush.msra.mxu0 %v328
    %355 = vmatmul.f32.gmra.mxu0 %v334
    %v356 = vpop.f32.mrf.mxu0
    %v357 = vadd.f32 0.0, %v356
    %358 = vmatmul.f32.gmra.mxu0 %v337
    %v359 = vpop.f32.mrf.mxu0
    %v360 = vadd.f32 0.0, %v359
    %361 = vdwg.mxu0
    %v363 = vsel %vm169, %v357, 0
    %v366 = vsel %vm169, %v360, 0
    %368 = vmatpush.msra.mxu0 0.0
    %369 = vmatpush.msra.mxu0 0.0
    %370 = vmatpush.msra.mxu0 0.0
    %371 = vmatpush.msra.mxu0 0.0
    %372 = vmatpush.msra.mxu0 0.0
    %373 = vmatpush.msra.mxu0 0.0
    %374 = vmatpush.msra.mxu0 0.0
    %375 = vmatpush.msra.mxu0 0.0
    %376 = vmatpush.msra.mxu0 0.0
    %377 = vmatpush.msra.mxu0 0.0
    %378 = vmatpush.msra.mxu0 0.0
    %379 = vmatpush.msra.mxu0 0.0
    %380 = vmatpush.msra.mxu0 0.0
    %381 = vmatpush.msra.mxu0 0.0
    %382 = vmatpush.msra.mxu0 %v162
    %383 = vmatpush.msra.mxu0 %v161
    %384 = vmatmul.f32.gmra.mxu0 %v363
    %v385 = vpop.f32.mrf.mxu0
    %v386 = vadd.f32 0.0, %v385
    %387 = vmatmul.f32.gmra.mxu0 %v366
    %v388 = vpop.f32.mrf.mxu0
    %v389 = vadd.f32 0.0, %v388
    %390 = vdwg.mxu0
    %v392 = vsel %vm169, %v257, 0
    %v395 = vsel %vm169, %v260, 0
    %397 = vmatpush.msra.mxu0 0.0
    %398 = vmatpush.msra.mxu0 0.0
    %399 = vmatpush.msra.mxu0 0.0
    %400 = vmatpush.msra.mxu0 0.0
    %401 = vmatpush.msra.mxu0 0.0
    %402 = vmatpush.msra.mxu0 0.0
    %403 = vmatpush.msra.mxu0 0.0
    %404 = vmatpush.msra.mxu0 0.0
    %405 = vmatpush.msra.mxu0 0.0
    %406 = vmatpush.msra.mxu0 0.0
    %407 = vmatpush.msra.mxu0 0.0
    %408 = vmatpush.msra.mxu0 0.0
    %409 = vmatpush.msra.mxu0 0.0
    %410 = vmatpush.msra.mxu0 0.0
    %411 = vmatpush.msra.mxu0 %v160
    %412 = vmatpush.msra.mxu0 %v159
    %413 = vmatmul.f32.gmra.mxu0 %v392
    %v414 = vpop.f32.mrf.mxu0
    %v415 = vadd.f32 %v386, %v414
    %416 = vmatmul.f32.gmra.mxu0 %v395
    %v417 = vpop.f32.mrf.mxu0
    %v418 = vadd.f32 %v389, %v417
    %419 = vdwg.mxu0
    %v420 = vadd.f32 %v118, %v415
    %v421 = vadd.f32 %v119, %v418
    %v422 = vld [vmem:[%s7] sm:$0x1]
    %v424 = vperm.slane %v422, 0
    %v426 = vadd.f32 %v420, %v424
    %v427 = vadd.f32 %v421, %v424
    %v428 = vld [vmem:[%s8] sm:$0x1]
    %v429 = vld [vmem:[%s9] sm:$0x1]
    %v430 = vsel %vm58, %v426, 0.0
    %431 = vadd.xlane.f32.xlu0 %v430
    %v432 = vpop.xlane.xlu0 %431
    %v433 = vsel %vm58, %v427, 0.0
    %434 = vadd.xlane.f32.xlu0 %v433
    %v435 = vpop.xlane.xlu0 %434
    %v436 = vmul.f32 %v432, %v71
    %v437 = vmul.f32 %v435, %v71
    %v438 = vsub.f32 %v426, %v436
    %v439 = vsub.f32 %v427, %v437
    %v440 = vmul.f32 %v438, %v438
    %v441 = vmul.f32 %v439, %v439
    %v442 = vsel %vm58, %v440, 0.0
    %443 = vadd.xlane.f32.xlu0 %v442
    %v444 = vpop.xlane.xlu0 %443
    %v445 = vsel %vm58, %v441, 0.0
    %446 = vadd.xlane.f32.xlu0 %v445
    %v447 = vpop.xlane.xlu0 %446
    %v448 = vmul.f32 %v444, %v71
    %v449 = vmul.f32 %v447, %v71
    %v450 = vadd.f32 %v448, 1e-12
    %v451 = vadd.f32 %v449, 1e-12
    %v452 = vrsqrt.pop %v450
    %v453 = vmul.f32 %v452, %v450
    %v454 = vmul.f32 %v453, %v452
    %v455 = vmul.f32 0.5, %v454
    %v456 = vsub.f32 1.5, %v455
    %v457 = vmul.f32 %v452, %v456
    %vm458 = vweird.f32 %v450
    %vm459 = vweird.f32 %v452
    %vm460 = vmor %vm458, %vm459
    %v461 = vsel %vm460, %v452, %v457
    %v462 = vrsqrt.pop %v451
    %v463 = vmul.f32 %v462, %v451
    %v464 = vmul.f32 %v463, %v462
    %v465 = vmul.f32 0.5, %v464
    %v466 = vsub.f32 1.5, %v465
    %v467 = vmul.f32 %v462, %v466
    %vm468 = vweird.f32 %v451
    %vm469 = vweird.f32 %v462
    %vm470 = vmor %vm468, %vm469
    %v471 = vsel %vm470, %v462, %v467
    %v472 = vmul.f32 %v438, %v461
    %v473 = vmul.f32 %v439, %v471
    %v475 = vperm.slane %v428, 0
    %v477 = vmul.f32 %v472, %v475
    %v478 = vmul.f32 %v473, %v475
    %v480 = vperm.slane %v429, 0
    %v482 = vadd.f32 %v477, %v480
    %v483 = vadd.f32 %v478, %v480
    %v484 = vld [vmem:[%s10] sm:$0xff]
    %v485 = vld [vmem:[%s10 + $0x8] sm:$0xff]
    %v486 = vld [vmem:[%s10 + $0x10] sm:$0xff]
    %v487 = vld [vmem:[%s10 + $0x18] sm:$0xff]
    %v488 = vld [vmem:[%s11] sm:$0x1]
    %v490 = vperm.slane %v488, 0
    %v493 = vsel %vm58, %v482, 0
    %v496 = vsel %vm58, %v483, 0
    %498 = vmatpush.msra.mxu0 0.0
    %499 = vmatpush.msra.mxu0 0.0
    %500 = vmatpush.msra.mxu0 0.0
    %501 = vmatpush.msra.mxu0 0.0
    %502 = vmatpush.msra.mxu0 0.0
    %503 = vmatpush.msra.mxu0 0.0
    %504 = vmatpush.msra.mxu0 0.0
    %505 = vmatpush.msra.mxu0 0.0
    %506 = vmatpush.msra.mxu0 0.0
    %507 = vmatpush.msra.mxu0 0.0
    %508 = vmatpush.msra.mxu0 0.0
    %509 = vmatpush.msra.mxu0 0.0
    %510 = vmatpush.msra.mxu0 %v487
    %511 = vmatpush.msra.mxu0 %v486
    %512 = vmatpush.msra.mxu0 %v485
    %513 = vmatpush.msra.mxu0 %v484
    %514 = vmatmul.f32.gmra.mxu0 %v493
    %v515 = vpop.f32.mrf.mxu0
    %v516 = vadd.f32 %v490, %v515
    %517 = vmatmul.f32.gmra.mxu0 %v496
    %v518 = vpop.f32.mrf.mxu0
    %v519 = vadd.f32 %v490, %v518
    %520 = vdwg.mxu0
    %v521 = vmul.f32 %v516, 0.5
    %v522 = vmul.f32 %v519, 0.5
    %v523 = vmul.f32 %v516, 0.044715
    %v524 = vmul.f32 %v519, 0.044715
    %v525 = vmul.f32 %v523, %v516
    %v526 = vmul.f32 %v524, %v519
    %v527 = vmul.f32 %v525, %v516
    %v528 = vmul.f32 %v526, %v519
    %v529 = vadd.f32 %v516, %v527
    %v530 = vadd.f32 %v519, %v528
    %v531 = vmul.f32 %v529, 0.7978846
    %v532 = vmul.f32 %v530, 0.7978846
    %v533 = vtanh.pop %v531
    %v534 = vtanh.pop %v532
    %v535 = vadd.f32 %v533, 1.0
    %v536 = vadd.f32 %v534, 1.0
    %v537 = vmul.f32 %v521, %v535
    %v538 = vmul.f32 %v522, %v536
    %v539 = vld [vmem:[%s12] sm:$0xff]
    %v540 = vld [vmem:[%s12 + $0x8] sm:$0xff]
    %v541 = vld [vmem:[%s12 + $0x10] sm:$0xff]
    %v542 = vld [vmem:[%s12 + $0x18] sm:$0xff]
    %v543 = vld [vmem:[%s12 + $0x20] sm:$0xff]
    %v544 = vld [vmem:[%s12 + $0x28] sm:$0xff]
    %v545 = vld [vmem:[%s12 + $0x30] sm:$0xff]
    %v546 = vld [vmem:[%s12 + $0x38] sm:$0xff]
    %v547 = vld [vmem:[%s13] sm:$0x1]
    %v549 = vperm.slane %v547, 0
    %vm551 = vcmask 523264
    %v553 = vsel %vm551, %v537, 0
    %v556 = vsel %vm551, %v538, 0
    %558 = vmatpush.msra.mxu0 0.0
    %559 = vmatpush.msra.mxu0 0.0
    %560 = vmatpush.msra.mxu0 0.0
    %561 = vmatpush.msra.mxu0 0.0
    %562 = vmatpush.msra.mxu0 0.0
    %563 = vmatpush.msra.mxu0 0.0
    %564 = vmatpush.msra.mxu0 0.0
    %565 = vmatpush.msra.mxu0 0.0
    %566 = vmatpush.msra.mxu0 %v546
    %567 = vmatpush.msra.mxu0 %v545
    %568 = vmatpush.msra.mxu0 %v544
    %569 = vmatpush.msra.mxu0 %v543
    %570 = vmatpush.msra.mxu0 %v542
    %571 = vmatpush.msra.mxu0 %v541
    %572 = vmatpush.msra.mxu0 %v540
    %573 = vmatpush.msra.mxu0 %v539
    %574 = vmatmul.f32.gmra.mxu0 %v553
    %v575 = vpop.f32.mrf.mxu0
    %v576 = vadd.f32 %v549, %v575
    %577 = vmatmul.f32.gmra.mxu0 %v556
    %v578 = vpop.f32.mrf.mxu0
    %v579 = vadd.f32 %v549, %v578
    %580 = vdwg.mxu0
    %v581 = vadd.f32 %v482, %v576
    %v582 = vadd.f32 %v483, %v579
    %v583 = vld [vmem:[%s14] sm:$0x1]
    %v584 = vld [vmem:[%s15] sm:$0x1]
    %v585 = vsel %vm58, %v581, 0.0
    %586 = vadd.xlane.f32.xlu0 %v585
    %v587 = vpop.xlane.xlu0 %586
    %v588 = vsel %vm58, %v582, 0.0
    %589 = vadd.xlane.f32.xlu0 %v588
    %v590 = vpop.xlane.xlu0 %589
    %v591 = vmul.f32 %v587, %v71
    %v592 = vmul.f32 %v590, %v71
    %v593 = vsub.f32 %v581, %v591
    %v594 = vsub.f32 %v582, %v592
    %v595 = vmul.f32 %v593, %v593
    %v596 = vmul.f32 %v594, %v594
    %v597 = vsel %vm58, %v595, 0.0
    %598 = vadd.xlane.f32.xlu0 %v597
    %v599 = vpop.xlane.xlu0 %598
    %v600 = vsel %vm58, %v596, 0.0
    %601 = vadd.xlane.f32.xlu0 %v600
    %v602 = vpop.xlane.xlu0 %601
    %v603 = vmul.f32 %v599, %v71
    %v604 = vmul.f32 %v602, %v71
    %v605 = vadd.f32 %v603, 1e-12
    %v606 = vadd.f32 %v604, 1e-12
    %v607 = vrsqrt.pop %v605
    %v608 = vmul.f32 %v607, %v605
    %v609 = vmul.f32 %v608, %v607
    %v610 = vmul.f32 0.5, %v609
    %v611 = vsub.f32 1.5, %v610
    %v612 = vmul.f32 %v607, %v611
    %vm613 = vweird.f32 %v605
    %vm614 = vweird.f32 %v607
    %vm615 = vmor %vm613, %vm614
    %v616 = vsel %vm615, %v607, %v612
    %v617 = vrsqrt.pop %v606
    %v618 = vmul.f32 %v617, %v606
    %v619 = vmul.f32 %v618, %v617
    %v620 = vmul.f32 0.5, %v619
    %v621 = vsub.f32 1.5, %v620
    %v622 = vmul.f32 %v617, %v621
    %vm623 = vweird.f32 %v606
    %vm624 = vweird.f32 %v617
    %vm625 = vmor %vm623, %vm624
    %v626 = vsel %vm625, %v617, %v622
    %v627 = vmul.f32 %v593, %v616
    %v628 = vmul.f32 %v594, %v626
    %v630 = vperm.slane %v583, 0
    %v632 = vmul.f32 %v627, %v630
    %v633 = vmul.f32 %v628, %v630
    %v635 = vperm.slane %v584, 0
    %v637 = vadd.f32 %v632, %v635
    %v638 = vadd.f32 %v633, %v635
    %s639 = scalar_lea.vmem %s4, 32
    %v640 = vld [vmem:[%s639] sm:$0xff]
    %v641 = vld [vmem:[%s639 + $0x8] sm:$0xff]
    %v642 = vld [vmem:[%s639 + $0x10] sm:$0xff]
    %v643 = vld [vmem:[%s639 + $0x18] sm:$0xff]
    %s644 = scalar_lea.vmem %s5, 1
    %v645 = vld [vmem:[%s644] sm:$0x1]
    %v647 = vperm.slane %v645, 0
    %v650 = vsel %vm58, %v637, 0
    %v653 = vsel %vm58, %v638, 0
    %655 = vmatpush.msra.mxu0 0.0
    %656 = vmatpush.msra.mxu0 0.0
    %657 = vmatpush.msra.mxu0 0.0
    %658 = vmatpush.msra.mxu0 0.0
    %659 = vmatpush.msra.mxu0 0.0
    %660 = vmatpush.msra.mxu0 0.0
    %661 = vmatpush.msra.mxu0 0.0
    %662 = vmatpush.msra.mxu0 0.0
    %663 = vmatpush.msra.mxu0 0.0
    %664 = vmatpush.msra.mxu0 0.0
    %665 = vmatpush.msra.mxu0 0.0
    %666 = vmatpush.msra.mxu0 0.0
    %667 = vmatpush.msra.mxu0 %v643
    %668 = vmatpush.msra.mxu0 %v642
    %669 = vmatpush.msra.mxu0 %v641
    %670 = vmatpush.msra.mxu0 %v640
    %671 = vmatmul.f32.gmra.mxu0 %v650
    %v672 = vpop.f32.mrf.mxu0
    %v673 = vadd.f32 %v647, %v672
    %674 = vmatmul.f32.gmra.mxu0 %v653
    %v675 = vpop.f32.mrf.mxu0
    %v676 = vadd.f32 %v647, %v675
    %677 = vdwg.mxu0
    %s678 = scalar_lea.vmem %s6, 32
    %v679 = vld [vmem:[%s678] sm:$0xff]
    %v680 = vld [vmem:[%s678 + $0x8] sm:$0xff]
    %v681 = vld [vmem:[%s678 + $0x10] sm:$0xff]
    %v682 = vld [vmem:[%s678 + $0x18] sm:$0xff]
    %685 = vrot.lane.b32.xlu0 %v673, 96
    %v686 = vpop.permute.xlu0 %685
    %687 = vrot.lane.b32.xlu0 %v676, 96
    %v688 = vpop.permute.xlu0 %687
    %v689 = vsel %vm169, %v673, 0
    %v691 = vsel %vm169, %v676, 0
    %v693 = vsel %vm169, %v686, 0
    %v695 = vsel %vm169, %v688, 0
    %697 = vmatpush.xpose.msra.mxu0 0.0
    %698 = vmatpush.xpose.msra.mxu0 0.0
    %699 = vmatpush.xpose.msra.mxu0 0.0
    %700 = vmatpush.xpose.msra.mxu0 0.0
    %701 = vmatpush.xpose.msra.mxu0 0.0
    %702 = vmatpush.xpose.msra.mxu0 0.0
    %703 = vmatpush.xpose.msra.mxu0 0.0
    %704 = vmatpush.xpose.msra.mxu0 0.0
    %705 = vmatpush.xpose.msra.mxu0 0.0
    %706 = vmatpush.xpose.msra.mxu0 0.0
    %707 = vmatpush.xpose.msra.mxu0 0.0
    %708 = vmatpush.xpose.msra.mxu0 0.0
    %709 = vmatpush.xpose.msra.mxu0 0.0
    %710 = vmatpush.xpose.msra.mxu0 0.0
    %711 = vmatpush.xpose.msra.mxu0 %v695
    %712 = vmatpush.xpose.msra.mxu0 %v693
    %713 = vmatmul.f32.gmra.mxu0 %v689
    %v714 = vpop.f32.mrf.mxu0
    %v715 = vadd.f32 0.0, %v714
    %716 = vmatmul.f32.gmra.mxu0 %v691
    %v717 = vpop.f32.mrf.mxu0
    %v718 = vadd.f32 0.0, %v717
    %719 = vdwg.mxu0
    %v720 = vmul.f32 %v715, 0.25
    %v721 = vmul.f32 %v718, 0.25
    %v722 = vadd.f32 %v720, %v120
    %v723 = vadd.f32 %v721, %v121
    %v724 = vsel %vm169, %v722, -inf
    %725 = vmax.xlane.f32.xlu0 %v724
    %v726 = vpop.xlane.xlu0 %725
    %v727 = vsel %vm169, %v723, -inf
    %728 = vmax.xlane.f32.xlu0 %v727
    %v729 = vpop.xlane.xlu0 %728
    %v730 = vsub.f32 %v722, %v726
    %v731 = vsub.f32 %v723, %v729
    %v732 = vmul.f32 %v730, 1.442695
    %v733 = vpow.pop %v732
    %v734 = vmul.f32 %v731, 1.442695
    %v735 = vpow.pop %v734
    %v736 = vsel %vm169, %v733, 0.0
    %737 = vadd.xlane.f32.xlu0 %v736
    %v738 = vpop.xlane.xlu0 %737
    %v739 = vsel %vm169, %v735, 0.0
    %740 = vadd.xlane.f32.xlu0 %v739
    %v741 = vpop.xlane.xlu0 %740
    %v742 = vrcp.pop %v738
    %v743 = vrcp.pop %v741
    %v744 = vmul.f32 %v733, %v742
    %v745 = vmul.f32 %v735, %v743
    %746 = vrot.lane.b32.xlu0 %v673, 64
    %v747 = vpop.permute.xlu0 %746
    %748 = vrot.lane.b32.xlu0 %v676, 64
    %v749 = vpop.permute.xlu0 %748
    %v753 = vsel %vm169, %v744, 0
    %v756 = vsel %vm169, %v745, 0
    %758 = vmatpush.msra.mxu0 0.0
    %759 = vmatpush.msra.mxu0 0.0
    %760 = vmatpush.msra.mxu0 0.0
    %761 = vmatpush.msra.mxu0 0.0
    %762 = vmatpush.msra.mxu0 0.0
    %763 = vmatpush.msra.mxu0 0.0
    %764 = vmatpush.msra.mxu0 0.0
    %765 = vmatpush.msra.mxu0 0.0
    %766 = vmatpush.msra.mxu0 0.0
    %767 = vmatpush.msra.mxu0 0.0
    %768 = vmatpush.msra.mxu0 0.0
    %769 = vmatpush.msra.mxu0 0.0
    %770 = vmatpush.msra.mxu0 0.0
    %771 = vmatpush.msra.mxu0 0.0
    %772 = vmatpush.msra.mxu0 %v749
    %773 = vmatpush.msra.mxu0 %v747
    %774 = vmatmul.f32.gmra.mxu0 %v753
    %v775 = vpop.f32.mrf.mxu0
    %v776 = vadd.f32 0.0, %v775
    %777 = vmatmul.f32.gmra.mxu0 %v756
    %v778 = vpop.f32.mrf.mxu0
    %v779 = vadd.f32 0.0, %v778
    %780 = vdwg.mxu0
    %781 = vrot.lane.b32.xlu0 %v673, 112
    %v782 = vpop.permute.xlu0 %781
    %783 = vrot.lane.b32.xlu0 %v676, 112
    %v784 = vpop.permute.xlu0 %783
    %785 = vrot.lane.b32.xlu0 %v673, 80
    %v786 = vpop.permute.xlu0 %785
    %787 = vrot.lane.b32.xlu0 %v676, 80
    %v788 = vpop.permute.xlu0 %787
    %v789 = vsel %vm169, %v782, 0
    %v791 = vsel %vm169, %v784, 0
    %v793 = vsel %vm169, %v786, 0
    %v795 = vsel %vm169, %v788, 0
    %797 = vmatpush.xpose.msra.mxu0 0.0
    %798 = vmatpush.xpose.msra.mxu0 0.0
    %799 = vmatpush.xpose.msra.mxu0 0.0
    %800 = vmatpush.xpose.msra.mxu0 0.0
    %801 = vmatpush.xpose.msra.mxu0 0.0
    %802 = vmatpush.xpose.msra.mxu0 0.0
    %803 = vmatpush.xpose.msra.mxu0 0.0
    %804 = vmatpush.xpose.msra.mxu0 0.0
    %805 = vmatpush.xpose.msra.mxu0 0.0
    %806 = vmatpush.xpose.msra.mxu0 0.0
    %807 = vmatpush.xpose.msra.mxu0 0.0
    %808 = vmatpush.xpose.msra.mxu0 0.0
    %809 = vmatpush.xpose.msra.mxu0 0.0
    %810 = vmatpush.xpose.msra.mxu0 0.0
    %811 = vmatpush.xpose.msra.mxu0 %v795
    %812 = vmatpush.xpose.msra.mxu0 %v793
    %813 = vmatmul.f32.gmra.mxu0 %v789
    %v814 = vpop.f32.mrf.mxu0
    %v815 = vadd.f32 0.0, %v814
    %816 = vmatmul.f32.gmra.mxu0 %v791
    %v817 = vpop.f32.mrf.mxu0
    %v818 = vadd.f32 0.0, %v817
    %819 = vdwg.mxu0
    %v820 = vmul.f32 %v815, 0.25
    %v821 = vmul.f32 %v818, 0.25
    %v822 = vadd.f32 %v820, %v120
    %v823 = vadd.f32 %v821, %v121
    %v824 = vsel %vm169, %v822, -inf
    %825 = vmax.xlane.f32.xlu0 %v824
    %v826 = vpop.xlane.xlu0 %825
    %v827 = vsel %vm169, %v823, -inf
    %828 = vmax.xlane.f32.xlu0 %v827
    %v829 = vpop.xlane.xlu0 %828
    %v830 = vsub.f32 %v822, %v826
    %v831 = vsub.f32 %v823, %v829
    %v832 = vmul.f32 %v830, 1.442695
    %v833 = vpow.pop %v832
    %v834 = vmul.f32 %v831, 1.442695
    %v835 = vpow.pop %v834
    %v836 = vsel %vm169, %v833, 0.0
    %837 = vadd.xlane.f32.xlu0 %v836
    %v838 = vpop.xlane.xlu0 %837
    %v839 = vsel %vm169, %v835, 0.0
    %840 = vadd.xlane.f32.xlu0 %v839
    %v841 = vpop.xlane.xlu0 %840
    %v842 = vrcp.pop %v838
    %v843 = vrcp.pop %v841
    %v844 = vmul.f32 %v833, %v842
    %v845 = vmul.f32 %v835, %v843
    %846 = vrot.lane.b32.xlu0 %v673, 48
    %v847 = vpop.permute.xlu0 %846
    %848 = vrot.lane.b32.xlu0 %v676, 48
    %v849 = vpop.permute.xlu0 %848
    %v853 = vsel %vm169, %v844, 0
    %v856 = vsel %vm169, %v845, 0
    %858 = vmatpush.msra.mxu0 0.0
    %859 = vmatpush.msra.mxu0 0.0
    %860 = vmatpush.msra.mxu0 0.0
    %861 = vmatpush.msra.mxu0 0.0
    %862 = vmatpush.msra.mxu0 0.0
    %863 = vmatpush.msra.mxu0 0.0
    %864 = vmatpush.msra.mxu0 0.0
    %865 = vmatpush.msra.mxu0 0.0
    %866 = vmatpush.msra.mxu0 0.0
    %867 = vmatpush.msra.mxu0 0.0
    %868 = vmatpush.msra.mxu0 0.0
    %869 = vmatpush.msra.mxu0 0.0
    %870 = vmatpush.msra.mxu0 0.0
    %871 = vmatpush.msra.mxu0 0.0
    %872 = vmatpush.msra.mxu0 %v849
    %873 = vmatpush.msra.mxu0 %v847
    %874 = vmatmul.f32.gmra.mxu0 %v853
    %v875 = vpop.f32.mrf.mxu0
    %v876 = vadd.f32 0.0, %v875
    %877 = vmatmul.f32.gmra.mxu0 %v856
    %v878 = vpop.f32.mrf.mxu0
    %v879 = vadd.f32 0.0, %v878
    %880 = vdwg.mxu0
    %v882 = vsel %vm169, %v876, 0
    %v885 = vsel %vm169, %v879, 0
    %887 = vmatpush.msra.mxu0 0.0
    %888 = vmatpush.msra.mxu0 0.0
    %889 = vmatpush.msra.mxu0 0.0
    %890 = vmatpush.msra.mxu0 0.0
    %891 = vmatpush.msra.mxu0 0.0
    %892 = vmatpush.msra.mxu0 0.0
    %893 = vmatpush.msra.mxu0 0.0
    %894 = vmatpush.msra.mxu0 0.0
    %895 = vmatpush.msra.mxu0 0.0
    %896 = vmatpush.msra.mxu0 0.0
    %897 = vmatpush.msra.mxu0 0.0
    %898 = vmatpush.msra.mxu0 0.0
    %899 = vmatpush.msra.mxu0 0.0
    %900 = vmatpush.msra.mxu0 0.0
    %901 = vmatpush.msra.mxu0 %v682
    %902 = vmatpush.msra.mxu0 %v681
    %903 = vmatmul.f32.gmra.mxu0 %v882
    %v904 = vpop.f32.mrf.mxu0
    %v905 = vadd.f32 0.0, %v904
    %906 = vmatmul.f32.gmra.mxu0 %v885
    %v907 = vpop.f32.mrf.mxu0
    %v908 = vadd.f32 0.0, %v907
    %909 = vdwg.mxu0
    %v911 = vsel %vm169, %v776, 0
    %v914 = vsel %vm169, %v779, 0
    %916 = vmatpush.msra.mxu0 0.0
    %917 = vmatpush.msra.mxu0 0.0
    %918 = vmatpush.msra.mxu0 0.0
    %919 = vmatpush.msra.mxu0 0.0
    %920 = vmatpush.msra.mxu0 0.0
    %921 = vmatpush.msra.mxu0 0.0
    %922 = vmatpush.msra.mxu0 0.0
    %923 = vmatpush.msra.mxu0 0.0
    %924 = vmatpush.msra.mxu0 0.0
    %925 = vmatpush.msra.mxu0 0.0
    %926 = vmatpush.msra.mxu0 0.0
    %927 = vmatpush.msra.mxu0 0.0
    %928 = vmatpush.msra.mxu0 0.0
    %929 = vmatpush.msra.mxu0 0.0
    %930 = vmatpush.msra.mxu0 %v680
    %931 = vmatpush.msra.mxu0 %v679
    %932 = vmatmul.f32.gmra.mxu0 %v911
    %v933 = vpop.f32.mrf.mxu0
    %v934 = vadd.f32 %v905, %v933
    %935 = vmatmul.f32.gmra.mxu0 %v914
    %v936 = vpop.f32.mrf.mxu0
    %v937 = vadd.f32 %v908, %v936
    %938 = vdwg.mxu0
    %v939 = vadd.f32 %v637, %v934
    %v940 = vadd.f32 %v638, %v937
    %s941 = scalar_lea.vmem %s7, 1
    %v942 = vld [vmem:[%s941] sm:$0x1]
    %v944 = vperm.slane %v942, 0
    %v946 = vadd.f32 %v939, %v944
    %v947 = vadd.f32 %v940, %v944
    %s948 = scalar_lea.vmem %s8, 1
    %v949 = vld [vmem:[%s948] sm:$0x1]
    %s950 = scalar_lea.vmem %s9, 1
    %v951 = vld [vmem:[%s950] sm:$0x1]
    %v952 = vsel %vm58, %v946, 0.0
    %953 = vadd.xlane.f32.xlu0 %v952
    %v954 = vpop.xlane.xlu0 %953
    %v955 = vsel %vm58, %v947, 0.0
    %956 = vadd.xlane.f32.xlu0 %v955
    %v957 = vpop.xlane.xlu0 %956
    %v958 = vmul.f32 %v954, %v71
    %v959 = vmul.f32 %v957, %v71
    %v960 = vsub.f32 %v946, %v958
    %v961 = vsub.f32 %v947, %v959
    %v962 = vmul.f32 %v960, %v960
    %v963 = vmul.f32 %v961, %v961
    %v964 = vsel %vm58, %v962, 0.0
    %965 = vadd.xlane.f32.xlu0 %v964
    %v966 = vpop.xlane.xlu0 %965
    %v967 = vsel %vm58, %v963, 0.0
    %968 = vadd.xlane.f32.xlu0 %v967
    %v969 = vpop.xlane.xlu0 %968
    %v970 = vmul.f32 %v966, %v71
    %v971 = vmul.f32 %v969, %v71
    %v972 = vadd.f32 %v970, 1e-12
    %v973 = vadd.f32 %v971, 1e-12
    %v974 = vrsqrt.pop %v972
    %v975 = vmul.f32 %v974, %v972
    %v976 = vmul.f32 %v975, %v974
    %v977 = vmul.f32 0.5, %v976
    %v978 = vsub.f32 1.5, %v977
    %v979 = vmul.f32 %v974, %v978
    %vm980 = vweird.f32 %v972
    %vm981 = vweird.f32 %v974
    %vm982 = vmor %vm980, %vm981
    %v983 = vsel %vm982, %v974, %v979
    %v984 = vrsqrt.pop %v973
    %v985 = vmul.f32 %v984, %v973
    %v986 = vmul.f32 %v985, %v984
    %v987 = vmul.f32 0.5, %v986
    %v988 = vsub.f32 1.5, %v987
    %v989 = vmul.f32 %v984, %v988
    %vm990 = vweird.f32 %v973
    %vm991 = vweird.f32 %v984
    %vm992 = vmor %vm990, %vm991
    %v993 = vsel %vm992, %v984, %v989
    %v994 = vmul.f32 %v960, %v983
    %v995 = vmul.f32 %v961, %v993
    %v997 = vperm.slane %v949, 0
    %v999 = vmul.f32 %v994, %v997
    %v1000 = vmul.f32 %v995, %v997
    %v1002 = vperm.slane %v951, 0
    %v1004 = vadd.f32 %v999, %v1002
    %v1005 = vadd.f32 %v1000, %v1002
    %s1006 = scalar_lea.vmem %s10, 32
    %v1007 = vld [vmem:[%s1006] sm:$0xff]
    %v1008 = vld [vmem:[%s1006 + $0x8] sm:$0xff]
    %v1009 = vld [vmem:[%s1006 + $0x10] sm:$0xff]
    %v1010 = vld [vmem:[%s1006 + $0x18] sm:$0xff]
    %s1011 = scalar_lea.vmem %s11, 1
    %v1012 = vld [vmem:[%s1011] sm:$0x1]
    %v1014 = vperm.slane %v1012, 0
    %v1017 = vsel %vm58, %v1004, 0
    %v1020 = vsel %vm58, %v1005, 0
    %1022 = vmatpush.msra.mxu0 0.0
    %1023 = vmatpush.msra.mxu0 0.0
    %1024 = vmatpush.msra.mxu0 0.0
    %1025 = vmatpush.msra.mxu0 0.0
    %1026 = vmatpush.msra.mxu0 0.0
    %1027 = vmatpush.msra.mxu0 0.0
    %1028 = vmatpush.msra.mxu0 0.0
    %1029 = vmatpush.msra.mxu0 0.0
    %1030 = vmatpush.msra.mxu0 0.0
    %1031 = vmatpush.msra.mxu0 0.0
    %1032 = vmatpush.msra.mxu0 0.0
    %1033 = vmatpush.msra.mxu0 0.0
    %1034 = vmatpush.msra.mxu0 %v1010
    %1035 = vmatpush.msra.mxu0 %v1009
    %1036 = vmatpush.msra.mxu0 %v1008
    %1037 = vmatpush.msra.mxu0 %v1007
    %1038 = vmatmul.f32.gmra.mxu0 %v1017
    %v1039 = vpop.f32.mrf.mxu0
    %v1040 = vadd.f32 %v1014, %v1039
    %1041 = vmatmul.f32.gmra.mxu0 %v1020
    %v1042 = vpop.f32.mrf.mxu0
    %v1043 = vadd.f32 %v1014, %v1042
    %1044 = vdwg.mxu0
    %v1045 = vmul.f32 %v1040, 0.5
    %v1046 = vmul.f32 %v1043, 0.5
    %v1047 = vmul.f32 %v1040, 0.044715
    %v1048 = vmul.f32 %v1043, 0.044715
    %v1049 = vmul.f32 %v1047, %v1040
    %v1050 = vmul.f32 %v1048, %v1043
    %v1051 = vmul.f32 %v1049, %v1040
    %v1052 = vmul.f32 %v1050, %v1043
    %v1053 = vadd.f32 %v1040, %v1051
    %v1054 = vadd.f32 %v1043, %v1052
    %v1055 = vmul.f32 %v1053, 0.7978846
    %v1056 = vmul.f32 %v1054, 0.7978846
    %v1057 = vtanh.pop %v1055
    %v1058 = vtanh.pop %v1056
    %v1059 = vadd.f32 %v1057, 1.0
    %v1060 = vadd.f32 %v1058, 1.0
    %v1061 = vmul.f32 %v1045, %v1059
    %v1062 = vmul.f32 %v1046, %v1060
    %s1063 = scalar_lea.vmem %s12, 64
    %v1064 = vld [vmem:[%s1063] sm:$0xff]
    %v1065 = vld [vmem:[%s1063 + $0x8] sm:$0xff]
    %v1066 = vld [vmem:[%s1063 + $0x10] sm:$0xff]
    %v1067 = vld [vmem:[%s1063 + $0x18] sm:$0xff]
    %v1068 = vld [vmem:[%s1063 + $0x20] sm:$0xff]
    %v1069 = vld [vmem:[%s1063 + $0x28] sm:$0xff]
    %v1070 = vld [vmem:[%s1063 + $0x30] sm:$0xff]
    %v1071 = vld [vmem:[%s1063 + $0x38] sm:$0xff]
    %s1072 = scalar_lea.vmem %s13, 1
    %v1073 = vld [vmem:[%s1072] sm:$0x1]
    %v1075 = vperm.slane %v1073, 0
    %v1078 = vsel %vm551, %v1061, 0
    %v1081 = vsel %vm551, %v1062, 0
    %1083 = vmatpush.msra.mxu0 0.0
    %1084 = vmatpush.msra.mxu0 0.0
    %1085 = vmatpush.msra.mxu0 0.0
    %1086 = vmatpush.msra.mxu0 0.0
    %1087 = vmatpush.msra.mxu0 0.0
    %1088 = vmatpush.msra.mxu0 0.0
    %1089 = vmatpush.msra.mxu0 0.0
    %1090 = vmatpush.msra.mxu0 0.0
    %1091 = vmatpush.msra.mxu0 %v1071
    %1092 = vmatpush.msra.mxu0 %v1070
    %1093 = vmatpush.msra.mxu0 %v1069
    %1094 = vmatpush.msra.mxu0 %v1068
    %1095 = vmatpush.msra.mxu0 %v1067
    %1096 = vmatpush.msra.mxu0 %v1066
    %1097 = vmatpush.msra.mxu0 %v1065
    %1098 = vmatpush.msra.mxu0 %v1064
    %1099 = vmatmul.f32.gmra.mxu0 %v1078
    %v1100 = vpop.f32.mrf.mxu0
    %v1101 = vadd.f32 %v1075, %v1100
    %1102 = vmatmul.f32.gmra.mxu0 %v1081
    %v1103 = vpop.f32.mrf.mxu0
    %v1104 = vadd.f32 %v1075, %v1103
    %1105 = vdwg.mxu0
    %v1106 = vadd.f32 %v1004, %v1101
    %v1107 = vadd.f32 %v1005, %v1104
    %s1108 = scalar_lea.vmem %s14, 1
    %v1109 = vld [vmem:[%s1108] sm:$0x1]
    %s1110 = scalar_lea.vmem %s15, 1
    %v1111 = vld [vmem:[%s1110] sm:$0x1]
    %v1112 = vsel %vm58, %v1106, 0.0
    %1113 = vadd.xlane.f32.xlu0 %v1112
    %v1114 = vpop.xlane.xlu0 %1113
    %v1115 = vsel %vm58, %v1107, 0.0
    %1116 = vadd.xlane.f32.xlu0 %v1115
    %v1117 = vpop.xlane.xlu0 %1116
    %v1118 = vmul.f32 %v1114, %v71
    %v1119 = vmul.f32 %v1117, %v71
    %v1120 = vsub.f32 %v1106, %v1118
    %v1121 = vsub.f32 %v1107, %v1119
    %v1122 = vmul.f32 %v1120, %v1120
    %v1123 = vmul.f32 %v1121, %v1121
    %v1124 = vsel %vm58, %v1122, 0.0
    %1125 = vadd.xlane.f32.xlu0 %v1124
    %v1126 = vpop.xlane.xlu0 %1125
    %v1127 = vsel %vm58, %v1123, 0.0
    %1128 = vadd.xlane.f32.xlu0 %v1127
    %v1129 = vpop.xlane.xlu0 %1128
    %v1130 = vmul.f32 %v1126, %v71
    %v1131 = vmul.f32 %v1129, %v71
    %v1132 = vadd.f32 %v1130, 1e-12
    %v1133 = vadd.f32 %v1131, 1e-12
    %v1134 = vrsqrt.pop %v1132
    %v1135 = vmul.f32 %v1134, %v1132
    %v1136 = vmul.f32 %v1135, %v1134
    %v1137 = vmul.f32 0.5, %v1136
    %v1138 = vsub.f32 1.5, %v1137
    %v1139 = vmul.f32 %v1134, %v1138
    %vm1140 = vweird.f32 %v1132
    %vm1141 = vweird.f32 %v1134
    %vm1142 = vmor %vm1140, %vm1141
    %v1143 = vsel %vm1142, %v1134, %v1139
    %v1144 = vrsqrt.pop %v1133
    %v1145 = vmul.f32 %v1144, %v1133
    %v1146 = vmul.f32 %v1145, %v1144
    %v1147 = vmul.f32 0.5, %v1146
    %v1148 = vsub.f32 1.5, %v1147
    %v1149 = vmul.f32 %v1144, %v1148
    %vm1150 = vweird.f32 %v1133
    %vm1151 = vweird.f32 %v1144
    %vm1152 = vmor %vm1150, %vm1151
    %v1153 = vsel %vm1152, %v1144, %v1149
    %v1154 = vmul.f32 %v1120, %v1143
    %v1155 = vmul.f32 %v1121, %v1153
    %v1157 = vperm.slane %v1109, 0
    %v1159 = vmul.f32 %v1154, %v1157
    %v1160 = vmul.f32 %v1155, %v1157
    %v1162 = vperm.slane %v1111, 0
    %v1164 = vadd.f32 %v1159, %v1162
    %v1165 = vadd.f32 %v1160, %v1162
    %1166 = vst.msk [vmem:[#allocation2] sm:$0xff] %vm58, %v1164
    %1167 = vst.msk [vmem:[#allocation2 + $0x8] sm:$0xff] %vm58, %v1165
    // Predicated region
    $region66: #{model_forward.1} parent=1 // pred_check
      _
    $region67: #{model_forward.1} parent=1 // pred_check_branch
      %1169 = sbr.rel (0) target = $region69
    $region68: #{model_forward.1} parent=1 // pred_region
      %1171 = vsyncadd [#allocation3], 0
      %s1172 = sshll.u32 [#allocation2], 4
      %s1173 = int_to_ptr.vmem [resolvable:$true] %s1172
      %s1174 = sshll.u32 %s16, 4
      %s1175 = int_to_ptr.hbm [resolvable:$true] %s1174
      %1180 = dma.vmem_to_hbm [thread:$0]  %s1173, 256, %s1175, [#allocation3], 128, 128, 8
    $region69: #{model_forward.1} parent=1 // pred_fallthru
      _
    // Predicated region
    $region70: #{model_forward.1} parent=1 // pred_check
      _
    $region71: #{model_forward.1} parent=1 // pred_check_branch
      %1182 = sbr.rel (0) target = $region73
    $region72: #{model_forward.1} parent=1 // pred_region
      %1184 = dma.done [#allocation3], 256
    $region73: #{model_forward.1} parent=1 // pred_fallthru
      _
    %1185 = vsyncpa [#allocation3], 1

</llo_original>
